<compile_context>
chip_gen: v5e
topology: v5e:2x2
jax: 0.10.0
libtpu: 0.0.40
codegen_flags: <defaults>
</compile_context>

<pallas_src>
import math

import jax
import jax.numpy as jnp
from jax.experimental import pallas as pl
from jax.experimental.pallas import tpu as pltpu


def _tmha_kernel(xq_ref, xk_ref, xv_ref,
                 wq_ref, wk_ref, wv_ref, wo_ref, bo_ref,
                 out_ref):
    # Block shapes:
    #   x*_ref  : (G, T, C)   -- G packed (b, n) slabs for this grid step
    #   w{q,k,v}_ref : (H, C, d) bf16   (W_Q already carries the 1/sqrt(d) scale)
    #   wo_ref  : (H, d, C) bf16
    #   bo_ref  : (1, C) f32
    G, T, C = out_ref.shape
    heads = wq_ref.shape[0]
    d = wq_ref.shape[-1]

    xq = xq_ref[...].astype(jnp.bfloat16)
    xk = xk_ref[...].astype(jnp.bfloat16)
    xv = xv_ref[...].astype(jnp.bfloat16)

    acc = jnp.zeros((G, T, C), jnp.float32)
    for h in range(heads):                      # small static unroll over heads
        # Head weights: static leading index on the ref (no value relayout).
        wq_b = jnp.broadcast_to(wq_ref[h], (G, C, d))
        wk_b = jnp.broadcast_to(wk_ref[h], (G, C, d))
        wv_b = jnp.broadcast_to(wv_ref[h], (G, C, d))
        wo_b = jnp.broadcast_to(wo_ref[h], (G, d, C))

        # QKV projections for this head (bf16 in, f32 acc).
        q = jnp.einsum('gtc,gcd->gtd', xq, wq_b,
                       preferred_element_type=jnp.float32)
        k = jnp.einsum('gtc,gcd->gtd', xk, wk_b,
                       preferred_element_type=jnp.float32)
        v = jnp.einsum('gtc,gcd->gtd', xv, wv_b,
                       preferred_element_type=jnp.float32)

        # scores = (Q / sqrt(d)) K^T, batched over the G slabs (no explicit .T).
        s = jnp.einsum('gtd,gsd->gts',
                       q.astype(jnp.bfloat16), k.astype(jnp.bfloat16),
                       preferred_element_type=jnp.float32)

        # Numerically-stable softmax over the last (T) axis, in f32.
        s = s - jnp.max(s, axis=-1, keepdims=True)
        p = jnp.exp(s)
        p = p * pl.reciprocal(jnp.sum(p, axis=-1, keepdims=True), approx=True)

        # context = attn @ V, then this head's slice of the output projection.
        ctx = jnp.einsum('gts,gsd->gtd',
                         p.astype(jnp.bfloat16), v.astype(jnp.bfloat16),
                         preferred_element_type=jnp.float32)
        acc = acc + jnp.einsum('gtd,gdc->gtc',
                               ctx.astype(jnp.bfloat16), wo_b,
                               preferred_element_type=jnp.float32)

    # Single bias broadcast/add in the epilogue.
    bias = jnp.broadcast_to(bo_ref[...].reshape(1, 1, C), (G, T, C))
    out_ref[...] = (acc + bias).astype(out_ref.dtype)


def _pick_slabs_per_step(bn, t, c, itemsize=4, vmem_budget=256 * 1024,
                         min_steps=2):
    """Pack as many (T, C) slabs per grid step as fits a modest VMEM budget,
    while keeping >= min_steps grid steps when possible (v7x megacore)."""
    max_slabs = max(1, vmem_budget // max(1, t * c * itemsize))
    g = min(bn, max_slabs)
    if bn >= min_steps:
        g = min(g, max(1, bn // min_steps))
    while bn % g:          # round down to a divisor of B*N
        g -= 1
    return g


def tmha_forward(input_Q, input_K, input_V, wq_t, wk_t, wv_t, wo_t, bo, *, heads):
    """Pallas forward for TMultiHeadAttention.

    input_*: [B, N, T, C] float32
    w*_t:    [C, C]  (pre-transposed: in x out)
    bo:      [1, C]
    """
    B, N, T, C = input_Q.shape
    d = C // heads
    assert d * heads == C, "embed_size must be divisible by heads"
    scale = 1.0 / math.sqrt(d)

    BN = B * N
    xq = input_Q.reshape(BN, T, C)
    xk = input_K.reshape(BN, T, C)
    xv = input_V.reshape(BN, T, C)

    # Head-blocked bf16 weights; fold the 1/sqrt(d) scale into W_Q.
    wq_h = (wq_t * scale).reshape(C, heads, d).transpose(1, 0, 2).astype(jnp.bfloat16)
    wk_h = wk_t.reshape(C, heads, d).transpose(1, 0, 2).astype(jnp.bfloat16)
    wv_h = wv_t.reshape(C, heads, d).transpose(1, 0, 2).astype(jnp.bfloat16)
    wo_h = wo_t.reshape(heads, d, C).astype(jnp.bfloat16)
    bo2 = bo.reshape(1, C).astype(jnp.float32)

    G = _pick_slabs_per_step(BN, T, C)
    steps = BN // G

    x_spec = pl.BlockSpec((G, T, C), lambda i: (i, 0, 0))
    wqkv_spec = pl.BlockSpec((heads, C, d), lambda i: (0, 0, 0))
    wo_spec = pl.BlockSpec((heads, d, C), lambda i: (0, 0, 0))
    b_spec = pl.BlockSpec((1, C), lambda i: (0, 0))

    out = pl.pallas_call(
        _tmha_kernel,
        out_shape=jax.ShapeDtypeStruct((BN, T, C), input_Q.dtype),
        grid_spec=pltpu.PrefetchScalarGridSpec(
            num_scalar_prefetch=0,
            grid=(steps,),
            in_specs=[x_spec, x_spec, x_spec,
                      wqkv_spec, wqkv_spec, wqkv_spec, wo_spec, b_spec],
            out_specs=x_spec,
        ),
        compiler_params=pltpu.CompilerParams(
            dimension_semantics=("parallel",)),
    )(xq, xk, xv, wq_h, wk_h, wv_h, wo_h, bo2)

    return out.reshape(B, N, T, C)


def tmha_reference(input_Q, input_K, input_V, wq_t, wk_t, wv_t, wo_t, bo, *, heads):
    """Pure-JAX (f32) reference mirroring the PyTorch forward."""
    B, N, T, C = input_Q.shape
    d_k = C // heads

    def proj(x, w):
        y = jnp.einsum('bntc,cd->bntd', x, w)
        y = y.reshape(B, N, T, heads, d_k)
        return jnp.transpose(y, (0, 3, 1, 2, 4))  # [B, H, N, T, d_k]

    Q = proj(input_Q, wq_t)
    K = proj(input_K, wk_t)
    V = proj(input_V, wv_t)

    scores = jnp.einsum('bhntd,bhnsd->bhnts', Q, K) / math.sqrt(d_k)
    attn = jax.nn.softmax(scores, axis=-1)
    ctx = jnp.einsum('bhnts,bhnsd->bhntd', attn, V)       # [B, H, N, T, d_k]
    ctx = jnp.transpose(ctx, (0, 2, 3, 1, 4)).reshape(B, N, T, C)
    return jnp.einsum('bntc,cd->bntd', ctx, wo_t) + bo.reshape(1, 1, 1, C)


if __name__ == "__main__":
    # Shapes consistent with the module's forward: [B, N, T, C]
    B, N, T, C = 2, 4, 8, 32
    heads = 4

    key = jax.random.PRNGKey(0)
    kq, kk, kv, kwq, kwk, kwv, kwo, kbo = jax.random.split(key, 8)

    input_Q = jax.random.normal(kq, (B, N, T, C), dtype=jnp.float32)
    input_K = jax.random.normal(kk, (B, N, T, C), dtype=jnp.float32)
    input_V = jax.random.normal(kv, (B, N, T, C), dtype=jnp.float32)

    # Deterministic "nn.Linear"-style params (uniform +-1/sqrt(fan_in)),
    # stored pre-transposed as [in, out].
    bound = 1.0 / math.sqrt(C)
    wq_t = jax.random.uniform(kwq, (C, C), jnp.float32, -bound, bound)
    wk_t = jax.random.uniform(kwk, (C, C), jnp.float32, -bound, bound)
    wv_t = jax.random.uniform(kwv, (C, C), jnp.float32, -bound, bound)
    wo_t = jax.random.uniform(kwo, (C, C), jnp.float32, -bound, bound)
    bo = jax.random.uniform(kbo, (1, C), jnp.float32, -bound, bound)

    out = tmha_forward(input_Q, input_K, input_V, wq_t, wk_t, wv_t, wo_t, bo,
                       heads=heads)
    out = jax.block_until_ready(out)

    ref = tmha_reference(input_Q, input_K, input_V, wq_t, wk_t, wv_t, wo_t, bo,
                         heads=heads)
    ref = jax.block_until_ready(ref)

    assert out.shape == (B, N, T, C)
    # bf16 MXU operands (f32 accumulation) vs. an all-f32 reference.
    assert jnp.allclose(out, ref, atol=5e-2, rtol=5e-2), "mismatch vs reference"

    print("KERNEL_OK")
</pallas_src>

<mosaic_0001>
module attributes {stable_mosaic.version = 11 : i64} {
  func.func @_tmha_kernel(%arg0: i32, %arg1: memref<4x8x32xf32, #tpu.memory_space<vmem>>, %arg2: memref<4x8x32xf32, #tpu.memory_space<vmem>>, %arg3: memref<4x8x32xf32, #tpu.memory_space<vmem>>, %arg4: memref<4x32x8xbf16, #tpu.memory_space<vmem>>, %arg5: memref<4x32x8xbf16, #tpu.memory_space<vmem>>, %arg6: memref<4x32x8xbf16, #tpu.memory_space<vmem>>, %arg7: memref<4x8x32xbf16, #tpu.memory_space<vmem>>, %arg8: memref<1x32xf32, #tpu.memory_space<vmem>>, %arg9: memref<4x8x32xf32, #tpu.memory_space<vmem>>) attributes {dimension_semantics = [#tpu.dimension_semantics<parallel>], iteration_bounds = array<i64: 2>, scalar_prefetch = 0 : i64, scratch_operands = 0 : i64, tpu.core_type = #tpu.core_type<tc>, window_params = [{transform_indices = @transform_0, window_bounds = array<i64: 4, 8, 32>}, {transform_indices = @transform_1, window_bounds = array<i64: 4, 8, 32>}, {transform_indices = @transform_2, window_bounds = array<i64: 4, 8, 32>}, {pipeline_mode = #tpu.pipeline_mode<synchronous>, transform_indices = @transform_3, window_bounds = array<i64: 4, 32, 8>}, {pipeline_mode = #tpu.pipeline_mode<synchronous>, transform_indices = @transform_4, window_bounds = array<i64: 4, 32, 8>}, {pipeline_mode = #tpu.pipeline_mode<synchronous>, transform_indices = @transform_5, window_bounds = array<i64: 4, 32, 8>}, {pipeline_mode = #tpu.pipeline_mode<synchronous>, transform_indices = @transform_6, window_bounds = array<i64: 4, 8, 32>}, {pipeline_mode = #tpu.pipeline_mode<synchronous>, transform_indices = @transform_7, window_bounds = array<i64: 1, 32>}, {transform_indices = @transform_8, window_bounds = array<i64: 4, 8, 32>}]} {
    %c0 = arith.constant 0 : index
    %c0_0 = arith.constant 0 : index
    %c0_1 = arith.constant 0 : index
    %0 = vector.load %arg1[%c0, %c0_0, %c0_1] : memref<4x8x32xf32, #tpu.memory_space<vmem>>, vector<4x8x32xf32>
    %1 = arith.truncf %0 : vector<4x8x32xf32> to vector<4x8x32xbf16>
    %c0_2 = arith.constant 0 : index
    %c0_3 = arith.constant 0 : index
    %c0_4 = arith.constant 0 : index
    %2 = vector.load %arg2[%c0_2, %c0_3, %c0_4] : memref<4x8x32xf32, #tpu.memory_space<vmem>>, vector<4x8x32xf32>
    %3 = arith.truncf %2 : vector<4x8x32xf32> to vector<4x8x32xbf16>
    %c0_5 = arith.constant 0 : index
    %c0_6 = arith.constant 0 : index
    %c0_7 = arith.constant 0 : index
    %4 = vector.load %arg3[%c0_5, %c0_6, %c0_7] : memref<4x8x32xf32, #tpu.memory_space<vmem>>, vector<4x8x32xf32>
    %5 = arith.truncf %4 : vector<4x8x32xf32> to vector<4x8x32xbf16>
    %cst = arith.constant 0.000000e+00 : f32
    %6 = vector.broadcast %cst : f32 to vector<4x8x32xf32>
    %c0_8 = arith.constant 0 : index
    %c0_9 = arith.constant 0 : index
    %c0_10 = arith.constant 0 : index
    %7 = vector.load %arg4[%c0_8, %c0_9, %c0_10] : memref<4x32x8xbf16, #tpu.memory_space<vmem>>, vector<1x32x8xbf16>
    %8 = vector.shape_cast %7 : vector<1x32x8xbf16> to vector<32x8xbf16>
    %9 = vector.shape_cast %8 : vector<32x8xbf16> to vector<1x32x8xbf16>
    %10 = vector.broadcast %9 : vector<1x32x8xbf16> to vector<4x32x8xbf16>
    %c0_11 = arith.constant 0 : index
    %c0_12 = arith.constant 0 : index
    %c0_13 = arith.constant 0 : index
    %11 = vector.load %arg5[%c0_11, %c0_12, %c0_13] : memref<4x32x8xbf16, #tpu.memory_space<vmem>>, vector<1x32x8xbf16>
    %12 = vector.shape_cast %11 : vector<1x32x8xbf16> to vector<32x8xbf16>
    %13 = vector.shape_cast %12 : vector<32x8xbf16> to vector<1x32x8xbf16>
    %14 = vector.broadcast %13 : vector<1x32x8xbf16> to vector<4x32x8xbf16>
    %c0_14 = arith.constant 0 : index
    %c0_15 = arith.constant 0 : index
    %c0_16 = arith.constant 0 : index
    %15 = vector.load %arg6[%c0_14, %c0_15, %c0_16] : memref<4x32x8xbf16, #tpu.memory_space<vmem>>, vector<1x32x8xbf16>
    %16 = vector.shape_cast %15 : vector<1x32x8xbf16> to vector<32x8xbf16>
    %17 = vector.shape_cast %16 : vector<32x8xbf16> to vector<1x32x8xbf16>
    %18 = vector.broadcast %17 : vector<1x32x8xbf16> to vector<4x32x8xbf16>
    %c0_17 = arith.constant 0 : index
    %c0_18 = arith.constant 0 : index
    %c0_19 = arith.constant 0 : index
    %19 = vector.load %arg7[%c0_17, %c0_18, %c0_19] : memref<4x8x32xbf16, #tpu.memory_space<vmem>>, vector<1x8x32xbf16>
    %20 = vector.shape_cast %19 : vector<1x8x32xbf16> to vector<8x32xbf16>
    %21 = vector.shape_cast %20 : vector<8x32xbf16> to vector<1x8x32xbf16>
    %22 = vector.broadcast %21 : vector<1x8x32xbf16> to vector<4x8x32xbf16>
    "tpu.trace_start"() <{level = 10 : i32, message = "gtc,gcd->gtd"}> : () -> ()
    %cst_20 = arith.constant dense<0.000000e+00> : vector<4x8x8xf32>
    %23 = tpu.matmul %1, %10, %cst_20 {dimension_numbers = #tpu.dot_dimension_numbers<[2], [1], [1], [2], [0, 0, 0, 1, 1, 2], [0], [0]>} : vector<4x8x32xbf16>, vector<4x32x8xbf16>, vector<4x8x8xf32> -> vector<4x8x8xf32>
    %cst_21 = arith.constant dense<0.000000e+00> : vector<4x8x8xf32>
    %24 = tpu.matmul %3, %14, %cst_21 {dimension_numbers = #tpu.dot_dimension_numbers<[2], [1], [1], [2], [0, 0, 0, 1, 1, 2], [0], [0]>} : vector<4x8x32xbf16>, vector<4x32x8xbf16>, vector<4x8x8xf32> -> vector<4x8x8xf32>
    %cst_22 = arith.constant dense<0.000000e+00> : vector<4x8x8xf32>
    %25 = tpu.matmul %5, %18, %cst_22 {dimension_numbers = #tpu.dot_dimension_numbers<[2], [1], [1], [2], [0, 0, 0, 1, 1, 2], [0], [0]>} : vector<4x8x32xbf16>, vector<4x32x8xbf16>, vector<4x8x8xf32> -> vector<4x8x8xf32>
    "tpu.trace_stop"() : () -> ()
    %26 = arith.truncf %23 : vector<4x8x8xf32> to vector<4x8x8xbf16>
    %27 = arith.truncf %24 : vector<4x8x8xf32> to vector<4x8x8xbf16>
    "tpu.trace_start"() <{level = 10 : i32, message = "gtd,gsd->gts"}> : () -> ()
    %cst_23 = arith.constant dense<0.000000e+00> : vector<4x8x8xf32>
    %28 = tpu.matmul %26, %27, %cst_23 {dimension_numbers = #tpu.dot_dimension_numbers<[2], [2], [1], [1], [0, 0, 0, 1, 1, 1], [0], [0]>} : vector<4x8x8xbf16>, vector<4x8x8xbf16>, vector<4x8x8xf32> -> vector<4x8x8xf32>
    "tpu.trace_stop"() : () -> ()
    %cst_24 = arith.constant dense<0xFF800000> : vector<4x8xf32>
    %29 = vector.multi_reduction <maximumf>, %28, %cst_24 [2] : vector<4x8x8xf32> to vector<4x8xf32>
    %30 = vector.shape_cast %29 : vector<4x8xf32> to vector<4x8x1xf32>
    %31 = vector.broadcast %30 : vector<4x8x1xf32> to vector<4x8x8xf32>
    %32 = arith.subf %28, %31 : vector<4x8x8xf32>
    %33 = math.exp %32 : vector<4x8x8xf32>
    %cst_25 = arith.constant dense<0.000000e+00> : vector<4x8xf32>
    %34 = vector.multi_reduction <add>, %33, %cst_25 [2] : vector<4x8x8xf32> to vector<4x8xf32>
    %35 = vector.shape_cast %34 : vector<4x8xf32> to vector<4x8x1xf32>
    %36 = tpu.reciprocal %35 {approx = true} : vector<4x8x1xf32> -> vector<4x8x1xf32>
    %37 = vector.broadcast %36 : vector<4x8x1xf32> to vector<4x8x8xf32>
    %38 = arith.mulf %33, %37 : vector<4x8x8xf32>
    %39 = arith.truncf %38 : vector<4x8x8xf32> to vector<4x8x8xbf16>
    %40 = arith.truncf %25 : vector<4x8x8xf32> to vector<4x8x8xbf16>
    "tpu.trace_start"() <{level = 10 : i32, message = "gts,gsd->gtd"}> : () -> ()
    %cst_26 = arith.constant dense<0.000000e+00> : vector<4x8x8xf32>
    %41 = tpu.matmul %39, %40, %cst_26 {dimension_numbers = #tpu.dot_dimension_numbers<[2], [1], [1], [2], [0, 0, 0, 1, 1, 2], [0], [0]>} : vector<4x8x8xbf16>, vector<4x8x8xbf16>, vector<4x8x8xf32> -> vector<4x8x8xf32>
    "tpu.trace_stop"() : () -> ()
    %42 = arith.truncf %41 : vector<4x8x8xf32> to vector<4x8x8xbf16>
    "tpu.trace_start"() <{level = 10 : i32, message = "gtd,gdc->gtc"}> : () -> ()
    %cst_27 = arith.constant dense<0.000000e+00> : vector<4x8x32xf32>
    %43 = tpu.matmul %42, %22, %cst_27 {dimension_numbers = #tpu.dot_dimension_numbers<[2], [1], [1], [2], [0, 0, 0, 1, 1, 2], [0], [0]>} : vector<4x8x8xbf16>, vector<4x8x32xbf16>, vector<4x8x32xf32> -> vector<4x8x32xf32>
    "tpu.trace_stop"() : () -> ()
    %44 = arith.addf %6, %43 : vector<4x8x32xf32>
    %c1 = arith.constant 1 : index
    %c0_28 = arith.constant 0 : index
    %c0_29 = arith.constant 0 : index
    %45 = vector.load %arg4[%c1, %c0_28, %c0_29] : memref<4x32x8xbf16, #tpu.memory_space<vmem>>, vector<1x32x8xbf16>
    %46 = vector.shape_cast %45 : vector<1x32x8xbf16> to vector<32x8xbf16>
    %47 = vector.shape_cast %46 : vector<32x8xbf16> to vector<1x32x8xbf16>
    %48 = vector.broadcast %47 : vector<1x32x8xbf16> to vector<4x32x8xbf16>
    %c1_30 = arith.constant 1 : index
    %c0_31 = arith.constant 0 : index
    %c0_32 = arith.constant 0 : index
    %49 = vector.load %arg5[%c1_30, %c0_31, %c0_32] : memref<4x32x8xbf16, #tpu.memory_space<vmem>>, vector<1x32x8xbf16>
    %50 = vector.shape_cast %49 : vector<1x32x8xbf16> to vector<32x8xbf16>
    %51 = vector.shape_cast %50 : vector<32x8xbf16> to vector<1x32x8xbf16>
    %52 = vector.broadcast %51 : vector<1x32x8xbf16> to vector<4x32x8xbf16>
    %c1_33 = arith.constant 1 : index
    %c0_34 = arith.constant 0 : index
    %c0_35 = arith.constant 0 : index
    %53 = vector.load %arg6[%c1_33, %c0_34, %c0_35] : memref<4x32x8xbf16, #tpu.memory_space<vmem>>, vector<1x32x8xbf16>
    %54 = vector.shape_cast %53 : vector<1x32x8xbf16> to vector<32x8xbf16>
    %55 = vector.shape_cast %54 : vector<32x8xbf16> to vector<1x32x8xbf16>
    %56 = vector.broadcast %55 : vector<1x32x8xbf16> to vector<4x32x8xbf16>
    %c1_36 = arith.constant 1 : index
    %c0_37 = arith.constant 0 : index
    %c0_38 = arith.constant 0 : index
    %57 = vector.load %arg7[%c1_36, %c0_37, %c0_38] : memref<4x8x32xbf16, #tpu.memory_space<vmem>>, vector<1x8x32xbf16>
    %58 = vector.shape_cast %57 : vector<1x8x32xbf16> to vector<8x32xbf16>
    %59 = vector.shape_cast %58 : vector<8x32xbf16> to vector<1x8x32xbf16>
    %60 = vector.broadcast %59 : vector<1x8x32xbf16> to vector<4x8x32xbf16>
    "tpu.trace_start"() <{level = 10 : i32, message = "gtc,gcd->gtd"}> : () -> ()
    %cst_39 = arith.constant dense<0.000000e+00> : vector<4x8x8xf32>
    %61 = tpu.matmul %1, %48, %cst_39 {dimension_numbers = #tpu.dot_dimension_numbers<[2], [1], [1], [2], [0, 0, 0, 1, 1, 2], [0], [0]>} : vector<4x8x32xbf16>, vector<4x32x8xbf16>, vector<4x8x8xf32> -> vector<4x8x8xf32>
    %cst_40 = arith.constant dense<0.000000e+00> : vector<4x8x8xf32>
    %62 = tpu.matmul %3, %52, %cst_40 {dimension_numbers = #tpu.dot_dimension_numbers<[2], [1], [1], [2], [0, 0, 0, 1, 1, 2], [0], [0]>} : vector<4x8x32xbf16>, vector<4x32x8xbf16>, vector<4x8x8xf32> -> vector<4x8x8xf32>
    %cst_41 = arith.constant dense<0.000000e+00> : vector<4x8x8xf32>
    %63 = tpu.matmul %5, %56, %cst_41 {dimension_numbers = #tpu.dot_dimension_numbers<[2], [1], [1], [2], [0, 0, 0, 1, 1, 2], [0], [0]>} : vector<4x8x32xbf16>, vector<4x32x8xbf16>, vector<4x8x8xf32> -> vector<4x8x8xf32>
    "tpu.trace_stop"() : () -> ()
    %64 = arith.truncf %61 : vector<4x8x8xf32> to vector<4x8x8xbf16>
    %65 = arith.truncf %62 : vector<4x8x8xf32> to vector<4x8x8xbf16>
    "tpu.trace_start"() <{level = 10 : i32, message = "gtd,gsd->gts"}> : () -> ()
    %cst_42 = arith.constant dense<0.000000e+00> : vector<4x8x8xf32>
    %66 = tpu.matmul %64, %65, %cst_42 {dimension_numbers = #tpu.dot_dimension_numbers<[2], [2], [1], [1], [0, 0, 0, 1, 1, 1], [0], [0]>} : vector<4x8x8xbf16>, vector<4x8x8xbf16>, vector<4x8x8xf32> -> vector<4x8x8xf32>
    "tpu.trace_stop"() : () -> ()
    %cst_43 = arith.constant dense<0xFF800000> : vector<4x8xf32>
    %67 = vector.multi_reduction <maximumf>, %66, %cst_43 [2] : vector<4x8x8xf32> to vector<4x8xf32>
    %68 = vector.shape_cast %67 : vector<4x8xf32> to vector<4x8x1xf32>
    %69 = vector.broadcast %68 : vector<4x8x1xf32> to vector<4x8x8xf32>
    %70 = arith.subf %66, %69 : vector<4x8x8xf32>
    %71 = math.exp %70 : vector<4x8x8xf32>
    %cst_44 = arith.constant dense<0.000000e+00> : vector<4x8xf32>
    %72 = vector.multi_reduction <add>, %71, %cst_44 [2] : vector<4x8x8xf32> to vector<4x8xf32>
    %73 = vector.shape_cast %72 : vector<4x8xf32> to vector<4x8x1xf32>
    %74 = tpu.reciprocal %73 {approx = true} : vector<4x8x1xf32> -> vector<4x8x1xf32>
    %75 = vector.broadcast %74 : vector<4x8x1xf32> to vector<4x8x8xf32>
    %76 = arith.mulf %71, %75 : vector<4x8x8xf32>
    %77 = arith.truncf %76 : vector<4x8x8xf32> to vector<4x8x8xbf16>
    %78 = arith.truncf %63 : vector<4x8x8xf32> to vector<4x8x8xbf16>
    "tpu.trace_start"() <{level = 10 : i32, message = "gts,gsd->gtd"}> : () -> ()
    %cst_45 = arith.constant dense<0.000000e+00> : vector<4x8x8xf32>
    %79 = tpu.matmul %77, %78, %cst_45 {dimension_numbers = #tpu.dot_dimension_numbers<[2], [1], [1], [2], [0, 0, 0, 1, 1, 2], [0], [0]>} : vector<4x8x8xbf16>, vector<4x8x8xbf16>, vector<4x8x8xf32> -> vector<4x8x8xf32>
    "tpu.trace_stop"() : () -> ()
    %80 = arith.truncf %79 : vector<4x8x8xf32> to vector<4x8x8xbf16>
    "tpu.trace_start"() <{level = 10 : i32, message = "gtd,gdc->gtc"}> : () -> ()
    %cst_46 = arith.constant dense<0.000000e+00> : vector<4x8x32xf32>
    %81 = tpu.matmul %80, %60, %cst_46 {dimension_numbers = #tpu.dot_dimension_numbers<[2], [1], [1], [2], [0, 0, 0, 1, 1, 2], [0], [0]>} : vector<4x8x8xbf16>, vector<4x8x32xbf16>, vector<4x8x32xf32> -> vector<4x8x32xf32>
    "tpu.trace_stop"() : () -> ()
    %82 = arith.addf %44, %81 : vector<4x8x32xf32>
    %c2 = arith.constant 2 : index
    %c0_47 = arith.constant 0 : index
    %c0_48 = arith.constant 0 : index
    %83 = vector.load %arg4[%c2, %c0_47, %c0_48] : memref<4x32x8xbf16, #tpu.memory_space<vmem>>, vector<1x32x8xbf16>
    %84 = vector.shape_cast %83 : vector<1x32x8xbf16> to vector<32x8xbf16>
    %85 = vector.shape_cast %84 : vector<32x8xbf16> to vector<1x32x8xbf16>
    %86 = vector.broadcast %85 : vector<1x32x8xbf16> to vector<4x32x8xbf16>
    %c2_49 = arith.constant 2 : index
    %c0_50 = arith.constant 0 : index
    %c0_51 = arith.constant 0 : index
    %87 = vector.load %arg5[%c2_49, %c0_50, %c0_51] : memref<4x32x8xbf16, #tpu.memory_space<vmem>>, vector<1x32x8xbf16>
    %88 = vector.shape_cast %87 : vector<1x32x8xbf16> to vector<32x8xbf16>
    %89 = vector.shape_cast %88 : vector<32x8xbf16> to vector<1x32x8xbf16>
    %90 = vector.broadcast %89 : vector<1x32x8xbf16> to vector<4x32x8xbf16>
    %c2_52 = arith.constant 2 : index
    %c0_53 = arith.constant 0 : index
    %c0_54 = arith.constant 0 : index
    %91 = vector.load %arg6[%c2_52, %c0_53, %c0_54] : memref<4x32x8xbf16, #tpu.memory_space<vmem>>, vector<1x32x8xbf16>
    %92 = vector.shape_cast %91 : vector<1x32x8xbf16> to vector<32x8xbf16>
    %93 = vector.shape_cast %92 : vector<32x8xbf16> to vector<1x32x8xbf16>
    %94 = vector.broadcast %93 : vector<1x32x8xbf16> to vector<4x32x8xbf16>
    %c2_55 = arith.constant 2 : index
    %c0_56 = arith.constant 0 : index
    %c0_57 = arith.constant 0 : index
    %95 = vector.load %arg7[%c2_55, %c0_56, %c0_57] : memref<4x8x32xbf16, #tpu.memory_space<vmem>>, vector<1x8x32xbf16>
    %96 = vector.shape_cast %95 : vector<1x8x32xbf16> to vector<8x32xbf16>
    %97 = vector.shape_cast %96 : vector<8x32xbf16> to vector<1x8x32xbf16>
    %98 = vector.broadcast %97 : vector<1x8x32xbf16> to vector<4x8x32xbf16>
    "tpu.trace_start"() <{level = 10 : i32, message = "gtc,gcd->gtd"}> : () -> ()
    %cst_58 = arith.constant dense<0.000000e+00> : vector<4x8x8xf32>
    %99 = tpu.matmul %1, %86, %cst_58 {dimension_numbers = #tpu.dot_dimension_numbers<[2], [1], [1], [2], [0, 0, 0, 1, 1, 2], [0], [0]>} : vector<4x8x32xbf16>, vector<4x32x8xbf16>, vector<4x8x8xf32> -> vector<4x8x8xf32>
    %cst_59 = arith.constant dense<0.000000e+00> : vector<4x8x8xf32>
    %100 = tpu.matmul %3, %90, %cst_59 {dimension_numbers = #tpu.dot_dimension_numbers<[2], [1], [1], [2], [0, 0, 0, 1, 1, 2], [0], [0]>} : vector<4x8x32xbf16>, vector<4x32x8xbf16>, vector<4x8x8xf32> -> vector<4x8x8xf32>
    %cst_60 = arith.constant dense<0.000000e+00> : vector<4x8x8xf32>
    %101 = tpu.matmul %5, %94, %cst_60 {dimension_numbers = #tpu.dot_dimension_numbers<[2], [1], [1], [2], [0, 0, 0, 1, 1, 2], [0], [0]>} : vector<4x8x32xbf16>, vector<4x32x8xbf16>, vector<4x8x8xf32> -> vector<4x8x8xf32>
    "tpu.trace_stop"() : () -> ()
    %102 = arith.truncf %99 : vector<4x8x8xf32> to vector<4x8x8xbf16>
    %103 = arith.truncf %100 : vector<4x8x8xf32> to vector<4x8x8xbf16>
    "tpu.trace_start"() <{level = 10 : i32, message = "gtd,gsd->gts"}> : () -> ()
    %cst_61 = arith.constant dense<0.000000e+00> : vector<4x8x8xf32>
    %104 = tpu.matmul %102, %103, %cst_61 {dimension_numbers = #tpu.dot_dimension_numbers<[2], [2], [1], [1], [0, 0, 0, 1, 1, 1], [0], [0]>} : vector<4x8x8xbf16>, vector<4x8x8xbf16>, vector<4x8x8xf32> -> vector<4x8x8xf32>
    "tpu.trace_stop"() : () -> ()
    %cst_62 = arith.constant dense<0xFF800000> : vector<4x8xf32>
    %105 = vector.multi_reduction <maximumf>, %104, %cst_62 [2] : vector<4x8x8xf32> to vector<4x8xf32>
    %106 = vector.shape_cast %105 : vector<4x8xf32> to vector<4x8x1xf32>
    %107 = vector.broadcast %106 : vector<4x8x1xf32> to vector<4x8x8xf32>
    %108 = arith.subf %104, %107 : vector<4x8x8xf32>
    %109 = math.exp %108 : vector<4x8x8xf32>
    %cst_63 = arith.constant dense<0.000000e+00> : vector<4x8xf32>
    %110 = vector.multi_reduction <add>, %109, %cst_63 [2] : vector<4x8x8xf32> to vector<4x8xf32>
    %111 = vector.shape_cast %110 : vector<4x8xf32> to vector<4x8x1xf32>
    %112 = tpu.reciprocal %111 {approx = true} : vector<4x8x1xf32> -> vector<4x8x1xf32>
    %113 = vector.broadcast %112 : vector<4x8x1xf32> to vector<4x8x8xf32>
    %114 = arith.mulf %109, %113 : vector<4x8x8xf32>
    %115 = arith.truncf %114 : vector<4x8x8xf32> to vector<4x8x8xbf16>
    %116 = arith.truncf %101 : vector<4x8x8xf32> to vector<4x8x8xbf16>
    "tpu.trace_start"() <{level = 10 : i32, message = "gts,gsd->gtd"}> : () -> ()
    %cst_64 = arith.constant dense<0.000000e+00> : vector<4x8x8xf32>
    %117 = tpu.matmul %115, %116, %cst_64 {dimension_numbers = #tpu.dot_dimension_numbers<[2], [1], [1], [2], [0, 0, 0, 1, 1, 2], [0], [0]>} : vector<4x8x8xbf16>, vector<4x8x8xbf16>, vector<4x8x8xf32> -> vector<4x8x8xf32>
    "tpu.trace_stop"() : () -> ()
    %118 = arith.truncf %117 : vector<4x8x8xf32> to vector<4x8x8xbf16>
    "tpu.trace_start"() <{level = 10 : i32, message = "gtd,gdc->gtc"}> : () -> ()
    %cst_65 = arith.constant dense<0.000000e+00> : vector<4x8x32xf32>
    %119 = tpu.matmul %118, %98, %cst_65 {dimension_numbers = #tpu.dot_dimension_numbers<[2], [1], [1], [2], [0, 0, 0, 1, 1, 2], [0], [0]>} : vector<4x8x8xbf16>, vector<4x8x32xbf16>, vector<4x8x32xf32> -> vector<4x8x32xf32>
    "tpu.trace_stop"() : () -> ()
    %120 = arith.addf %82, %119 : vector<4x8x32xf32>
    %c3 = arith.constant 3 : index
    %c0_66 = arith.constant 0 : index
    %c0_67 = arith.constant 0 : index
    %121 = vector.load %arg4[%c3, %c0_66, %c0_67] : memref<4x32x8xbf16, #tpu.memory_space<vmem>>, vector<1x32x8xbf16>
    %122 = vector.shape_cast %121 : vector<1x32x8xbf16> to vector<32x8xbf16>
    %123 = vector.shape_cast %122 : vector<32x8xbf16> to vector<1x32x8xbf16>
    %124 = vector.broadcast %123 : vector<1x32x8xbf16> to vector<4x32x8xbf16>
    %c3_68 = arith.constant 3 : index
    %c0_69 = arith.constant 0 : index
    %c0_70 = arith.constant 0 : index
    %125 = vector.load %arg5[%c3_68, %c0_69, %c0_70] : memref<4x32x8xbf16, #tpu.memory_space<vmem>>, vector<1x32x8xbf16>
    %126 = vector.shape_cast %125 : vector<1x32x8xbf16> to vector<32x8xbf16>
    %127 = vector.shape_cast %126 : vector<32x8xbf16> to vector<1x32x8xbf16>
    %128 = vector.broadcast %127 : vector<1x32x8xbf16> to vector<4x32x8xbf16>
    %c3_71 = arith.constant 3 : index
    %c0_72 = arith.constant 0 : index
    %c0_73 = arith.constant 0 : index
    %129 = vector.load %arg6[%c3_71, %c0_72, %c0_73] : memref<4x32x8xbf16, #tpu.memory_space<vmem>>, vector<1x32x8xbf16>
    %130 = vector.shape_cast %129 : vector<1x32x8xbf16> to vector<32x8xbf16>
    %131 = vector.shape_cast %130 : vector<32x8xbf16> to vector<1x32x8xbf16>
    %132 = vector.broadcast %131 : vector<1x32x8xbf16> to vector<4x32x8xbf16>
    %c3_74 = arith.constant 3 : index
    %c0_75 = arith.constant 0 : index
    %c0_76 = arith.constant 0 : index
    %133 = vector.load %arg7[%c3_74, %c0_75, %c0_76] : memref<4x8x32xbf16, #tpu.memory_space<vmem>>, vector<1x8x32xbf16>
    %134 = vector.shape_cast %133 : vector<1x8x32xbf16> to vector<8x32xbf16>
    %135 = vector.shape_cast %134 : vector<8x32xbf16> to vector<1x8x32xbf16>
    %136 = vector.broadcast %135 : vector<1x8x32xbf16> to vector<4x8x32xbf16>
    "tpu.trace_start"() <{level = 10 : i32, message = "gtc,gcd->gtd"}> : () -> ()
    %cst_77 = arith.constant dense<0.000000e+00> : vector<4x8x8xf32>
    %137 = tpu.matmul %1, %124, %cst_77 {dimension_numbers = #tpu.dot_dimension_numbers<[2], [1], [1], [2], [0, 0, 0, 1, 1, 2], [0], [0]>} : vector<4x8x32xbf16>, vector<4x32x8xbf16>, vector<4x8x8xf32> -> vector<4x8x8xf32>
    %cst_78 = arith.constant dense<0.000000e+00> : vector<4x8x8xf32>
    %138 = tpu.matmul %3, %128, %cst_78 {dimension_numbers = #tpu.dot_dimension_numbers<[2], [1], [1], [2], [0, 0, 0, 1, 1, 2], [0], [0]>} : vector<4x8x32xbf16>, vector<4x32x8xbf16>, vector<4x8x8xf32> -> vector<4x8x8xf32>
    %cst_79 = arith.constant dense<0.000000e+00> : vector<4x8x8xf32>
    %139 = tpu.matmul %5, %132, %cst_79 {dimension_numbers = #tpu.dot_dimension_numbers<[2], [1], [1], [2], [0, 0, 0, 1, 1, 2], [0], [0]>} : vector<4x8x32xbf16>, vector<4x32x8xbf16>, vector<4x8x8xf32> -> vector<4x8x8xf32>
    "tpu.trace_stop"() : () -> ()
    %140 = arith.truncf %137 : vector<4x8x8xf32> to vector<4x8x8xbf16>
    %141 = arith.truncf %138 : vector<4x8x8xf32> to vector<4x8x8xbf16>
    "tpu.trace_start"() <{level = 10 : i32, message = "gtd,gsd->gts"}> : () -> ()
    %cst_80 = arith.constant dense<0.000000e+00> : vector<4x8x8xf32>
    %142 = tpu.matmul %140, %141, %cst_80 {dimension_numbers = #tpu.dot_dimension_numbers<[2], [2], [1], [1], [0, 0, 0, 1, 1, 1], [0], [0]>} : vector<4x8x8xbf16>, vector<4x8x8xbf16>, vector<4x8x8xf32> -> vector<4x8x8xf32>
    "tpu.trace_stop"() : () -> ()
    %cst_81 = arith.constant dense<0xFF800000> : vector<4x8xf32>
    %143 = vector.multi_reduction <maximumf>, %142, %cst_81 [2] : vector<4x8x8xf32> to vector<4x8xf32>
    %144 = vector.shape_cast %143 : vector<4x8xf32> to vector<4x8x1xf32>
    %145 = vector.broadcast %144 : vector<4x8x1xf32> to vector<4x8x8xf32>
    %146 = arith.subf %142, %145 : vector<4x8x8xf32>
    %147 = math.exp %146 : vector<4x8x8xf32>
    %cst_82 = arith.constant dense<0.000000e+00> : vector<4x8xf32>
    %148 = vector.multi_reduction <add>, %147, %cst_82 [2] : vector<4x8x8xf32> to vector<4x8xf32>
    %149 = vector.shape_cast %148 : vector<4x8xf32> to vector<4x8x1xf32>
    %150 = tpu.reciprocal %149 {approx = true} : vector<4x8x1xf32> -> vector<4x8x1xf32>
    %151 = vector.broadcast %150 : vector<4x8x1xf32> to vector<4x8x8xf32>
    %152 = arith.mulf %147, %151 : vector<4x8x8xf32>
    %153 = arith.truncf %152 : vector<4x8x8xf32> to vector<4x8x8xbf16>
    %154 = arith.truncf %139 : vector<4x8x8xf32> to vector<4x8x8xbf16>
    "tpu.trace_start"() <{level = 10 : i32, message = "gts,gsd->gtd"}> : () -> ()
    %cst_83 = arith.constant dense<0.000000e+00> : vector<4x8x8xf32>
    %155 = tpu.matmul %153, %154, %cst_83 {dimension_numbers = #tpu.dot_dimension_numbers<[2], [1], [1], [2], [0, 0, 0, 1, 1, 2], [0], [0]>} : vector<4x8x8xbf16>, vector<4x8x8xbf16>, vector<4x8x8xf32> -> vector<4x8x8xf32>
    "tpu.trace_stop"() : () -> ()
    %156 = arith.truncf %155 : vector<4x8x8xf32> to vector<4x8x8xbf16>
    "tpu.trace_start"() <{level = 10 : i32, message = "gtd,gdc->gtc"}> : () -> ()
    %cst_84 = arith.constant dense<0.000000e+00> : vector<4x8x32xf32>
    %157 = tpu.matmul %156, %136, %cst_84 {dimension_numbers = #tpu.dot_dimension_numbers<[2], [1], [1], [2], [0, 0, 0, 1, 1, 2], [0], [0]>} : vector<4x8x8xbf16>, vector<4x8x32xbf16>, vector<4x8x32xf32> -> vector<4x8x32xf32>
    "tpu.trace_stop"() : () -> ()
    %158 = arith.addf %120, %157 : vector<4x8x32xf32>
    %c0_85 = arith.constant 0 : index
    %c0_86 = arith.constant 0 : index
    %159 = vector.load %arg8[%c0_85, %c0_86] : memref<1x32xf32, #tpu.memory_space<vmem>>, vector<1x32xf32>
    %160 = vector.shape_cast %159 : vector<1x32xf32> to vector<1x1x32xf32>
    %161 = vector.shape_cast %160 : vector<1x1x32xf32> to vector<1x1x32xf32>
    %162 = vector.broadcast %161 : vector<1x1x32xf32> to vector<4x8x32xf32>
    %163 = arith.addf %158, %162 : vector<4x8x32xf32>
    %c0_87 = arith.constant 0 : index
    %c0_88 = arith.constant 0 : index
    %c0_89 = arith.constant 0 : index
    %164 = vector.load %arg9[%c0_87, %c0_88, %c0_89] : memref<4x8x32xf32, #tpu.memory_space<vmem>>, vector<4x8x32xf32>
    tpu.vector_store %arg9[%c0_87, %c0_88, %c0_89], %163 {strides = array<i32>} : memref<4x8x32xf32, #tpu.memory_space<vmem>>, vector<4x8x32xf32>,
    return
  }
  func.func @transform_0(%arg0: i32) -> (i32, i32, i32) {
    %c0_i32 = arith.constant 0 : i32
    %c0_i32_0 = arith.constant 0 : i32
    %c0_i32_1 = arith.constant 0 : i32
    return %arg0, %c0_i32, %c0_i32_0 : i32, i32, i32
  }
  func.func @transform_1(%arg0: i32) -> (i32, i32, i32) {
    %c0_i32 = arith.constant 0 : i32
    %c0_i32_0 = arith.constant 0 : i32
    %c0_i32_1 = arith.constant 0 : i32
    return %arg0, %c0_i32, %c0_i32_0 : i32, i32, i32
  }
  func.func @transform_2(%arg0: i32) -> (i32, i32, i32) {
    %c0_i32 = arith.constant 0 : i32
    %c0_i32_0 = arith.constant 0 : i32
    %c0_i32_1 = arith.constant 0 : i32
    return %arg0, %c0_i32, %c0_i32_0 : i32, i32, i32
  }
  func.func @transform_3(%arg0: i32) -> (i32, i32, i32) {
    %c0_i32 = arith.constant 0 : i32
    %c0_i32_0 = arith.constant 0 : i32
    %c0_i32_1 = arith.constant 0 : i32
    %c0_i32_2 = arith.constant 0 : i32
    return %c0_i32, %c0_i32_0, %c0_i32_1 : i32, i32, i32
  }
  func.func @transform_4(%arg0: i32) -> (i32, i32, i32) {
    %c0_i32 = arith.constant 0 : i32
    %c0_i32_0 = arith.constant 0 : i32
    %c0_i32_1 = arith.constant 0 : i32
    %c0_i32_2 = arith.constant 0 : i32
    return %c0_i32, %c0_i32_0, %c0_i32_1 : i32, i32, i32
  }
  func.func @transform_5(%arg0: i32) -> (i32, i32, i32) {
    %c0_i32 = arith.constant 0 : i32
    %c0_i32_0 = arith.constant 0 : i32
    %c0_i32_1 = arith.constant 0 : i32
    %c0_i32_2 = arith.constant 0 : i32
    return %c0_i32, %c0_i32_0, %c0_i32_1 : i32, i32, i32
  }
  func.func @transform_6(%arg0: i32) -> (i32, i32, i32) {
    %c0_i32 = arith.constant 0 : i32
    %c0_i32_0 = arith.constant 0 : i32
    %c0_i32_1 = arith.constant 0 : i32
    %c0_i32_2 = arith.constant 0 : i32
    return %c0_i32, %c0_i32_0, %c0_i32_1 : i32, i32, i32
  }
  func.func @transform_7(%arg0: i32) -> (i32, i32) {
    %c0_i32 = arith.constant 0 : i32
    %c0_i32_0 = arith.constant 0 : i32
    %c0_i32_1 = arith.constant 0 : i32
    return %c0_i32, %c0_i32_0 : i32, i32
  }
  func.func @transform_8(%arg0: i32) -> (i32, i32, i32) {
    %c0_i32 = arith.constant 0 : i32
    %c0_i32_0 = arith.constant 0 : i32
    %c0_i32_1 = arith.constant 0 : i32
    return %arg0, %c0_i32, %c0_i32_0 : i32, i32, i32
  }
}

</mosaic_0001>

<llo_original>
// kernel: tpu_custom_call.1
$region0: #{tpu_custom_call.1}
  #allocation0 [shape = 'u32[]', space=smem, size = 0x4, offset = 0x4, fixed_abs, tag = 'smem constant byte address 0x4 - core index']
  #allocation1 [shape = 'u32[72,128]{1,0:T(1,128)}', space=vmem, size = 0x9000, scoped, tag = 'internal scratch']
  %s0 = inlined_call_operand.vmem [shape: f32[8,8,32], index: 0, kind: input, shape index: {}]
  %s1 = inlined_call_operand.vmem [shape: f32[8,8,32], index: 1, kind: input, shape index: {}]
  %s2 = inlined_call_operand.vmem [shape: f32[8,8,32], index: 2, kind: input, shape index: {}]
  %s3 = inlined_call_operand.vmem [shape: bf16[4,32,8], index: 3, kind: input, shape index: {}]
  %s4 = inlined_call_operand.vmem [shape: bf16[4,32,8], index: 4, kind: input, shape index: {}]
  %s5 = inlined_call_operand.vmem [shape: bf16[4,32,8], index: 5, kind: input, shape index: {}]
  %s6 = inlined_call_operand.vmem [shape: bf16[4,8,32], index: 6, kind: input, shape index: {}]
  %s7 = inlined_call_operand.vmem [shape: f32[1,32], index: 7, kind: input, shape index: {}]
  %s8 = inlined_call_operand.hbm [shape: f32[8,8,32], index: 8, kind: output, shape index: {}]
  %s9 = sld [smem:[#allocation0]]
  $region65: #{tpu_custom_call.1} parent=0
    _
  %s11 = ssub.s32 1, %s9
  %s12 = scalar_select 0, %s11, %s9
  $region1: #{tpu_custom_call.1} parent=0
    #allocation2 [shape = 'u8[32768]{0}', space=vmem, size = 0x8000, scoped, tag = 'output window, operand 0']
    #allocation3 [shape = 's32[2]{0}', space=sflag, size = 0x8, scoped, tag = 'scoped memory for tpu_custom_call.1']
    %13 = vsyncpa [#allocation3], 0
    %s14 = scalar_lea.sflag [#allocation3], 1
    %15 = vsyncpa %s14, 0
    loop: start=0, step=1, limit=4
    $region2: #{tpu_custom_call.1} parent=1 // loop_pre_header
      _
    $region3: #{tpu_custom_call.1} parent=1 // loop_header
      %s17 = sphi 0, %s21
      %p18 = scmp.ge.s32.totalorder %s17, 4
      %s27 = sphi 0, %s29
      %s30 = sphi 0, %s27
      %s31 = sphi 0, %s30
      %s47 = sphi 0, %s31
      %s53 = sphi 0, %s55
      %s56 = sphi 0, %s53
      %s57 = sphi 0, %s56
      %s73 = sphi 0, %s57
      %s79 = sphi 0, %s81
      %s82 = sphi 0, %s79
      %s83 = sphi 0, %s82
      %s99 = sphi 0, %s83
      %s103 = sphi 0, %s103
      %s105 = sphi 0, %s103
      %s106 = sphi 0, %s105
      %s120 = sphi 0, %s106
      %s124 = sphi 0, %s124
      %s126 = sphi 0, %s124
      %s127 = sphi 0, %s126
      %s141 = sphi 0, %s127
      %s145 = sphi 0, %s145
      %s147 = sphi 0, %s145
      %s148 = sphi 0, %s147
      %s162 = sphi 0, %s148
      %s166 = sphi 0, %s166
      %s168 = sphi 0, %s166
      %s169 = sphi 0, %s168
      %s183 = sphi 0, %s169
      %s187 = sphi 0, %s187
      %s189 = sphi 0, %s187
      %s190 = sphi 0, %s189
      %s204 = sphi 0, %s190
      %s210 = sphi 0, %s212
      %s213 = sphi 0, %s210
      %s214 = sphi 0, %s213
      %s230 = sphi 0, %s214
    $region4: #{tpu_custom_call.1} parent=1 // loop_header_branch
      %20 = sbr.rel (%p18) target = $region8
    $region5: #{tpu_custom_call.1} parent=1 // loop_body
      %s22 = ssub.s32 %s17, 1
      %s23 = ssub.s32 %s17, 2
      %s24 = sadd.s32 %s17, 1
      %s25 = ssub.s32 %s17, %s24
      %p26 = scmp.eq.s32.totalorder %s25, 0
      %s28 = sadd.s32 %s27, 1
      %s29 = scalar_select %p26, %s27, %s28
      %p32 = pneg %p26
      %p33 = scmp.eq.s32.totalorder %s17, 1
      %p34 = por %p32, %p33
      %p35 = scmp.ne.s32.totalorder %s27, %s30
      %p36 = scmp.eq.s32.totalorder %s17, 0
      %p37 = por %p35, %p36
      %p38 = scmp.ne.s32.totalorder %s27, %s30
      %p39 = scmp.eq.s32.totalorder %s22, 1
      %p40 = por %p38, %p39
      %p41 = scmp.ne.s32.totalorder %s30, %s31
      %p42 = scmp.eq.s32.totalorder %s22, 0
      %p43 = por %p41, %p42
      %p44 = scmp.ne.s32.totalorder %s30, %s31
      %p45 = scmp.eq.s32.totalorder %s23, 1
      %p46 = por %p44, %p45
      %p48 = scmp.ne.s32.totalorder %s31, %s47
      %p49 = scmp.eq.s32.totalorder %s23, 0
      %p50 = por %p48, %p49
      %s51 = ssub.s32 %s17, %s24
      %p52 = scmp.eq.s32.totalorder %s51, 0
      %s54 = sadd.s32 %s53, 1
      %s55 = scalar_select %p52, %s53, %s54
      %p58 = pneg %p52
      %p59 = scmp.eq.s32.totalorder %s17, 1
      %p60 = por %p58, %p59
      %p61 = scmp.ne.s32.totalorder %s53, %s56
      %p62 = scmp.eq.s32.totalorder %s17, 0
      %p63 = por %p61, %p62
      %p64 = scmp.ne.s32.totalorder %s53, %s56
      %p65 = scmp.eq.s32.totalorder %s22, 1
      %p66 = por %p64, %p65
      %p67 = scmp.ne.s32.totalorder %s56, %s57
      %p68 = scmp.eq.s32.totalorder %s22, 0
      %p69 = por %p67, %p68
      %p70 = scmp.ne.s32.totalorder %s56, %s57
      %p71 = scmp.eq.s32.totalorder %s23, 1
      %p72 = por %p70, %p71
      %p74 = scmp.ne.s32.totalorder %s57, %s73
      %p75 = scmp.eq.s32.totalorder %s23, 0
      %p76 = por %p74, %p75
      %s77 = ssub.s32 %s17, %s24
      %p78 = scmp.eq.s32.totalorder %s77, 0
      %s80 = sadd.s32 %s79, 1
      %s81 = scalar_select %p78, %s79, %s80
      %p84 = pneg %p78
      %p85 = scmp.eq.s32.totalorder %s17, 1
      %p86 = por %p84, %p85
      %p87 = scmp.ne.s32.totalorder %s79, %s82
      %p88 = scmp.eq.s32.totalorder %s17, 0
      %p89 = por %p87, %p88
      %p90 = scmp.ne.s32.totalorder %s79, %s82
      %p91 = scmp.eq.s32.totalorder %s22, 1
      %p92 = por %p90, %p91
      %p93 = scmp.ne.s32.totalorder %s82, %s83
      %p94 = scmp.eq.s32.totalorder %s22, 0
      %p95 = por %p93, %p94
      %p96 = scmp.ne.s32.totalorder %s82, %s83
      %p97 = scmp.eq.s32.totalorder %s23, 1
      %p98 = por %p96, %p97
      %p100 = scmp.ne.s32.totalorder %s83, %s99
      %p101 = scmp.eq.s32.totalorder %s23, 0
      %p102 = por %p100, %p101
      %s104 = sadd.s32 %s103, 1
      %p107 = scmp.eq.s32.totalorder %s17, 1
      %p108 = scmp.ne.s32.totalorder %s103, %s105
      %p109 = scmp.eq.s32.totalorder %s17, 0
      %p110 = por %p108, %p109
      %p111 = scmp.ne.s32.totalorder %s103, %s105
      %p112 = scmp.eq.s32.totalorder %s22, 1
      %p113 = por %p111, %p112
      %p114 = scmp.ne.s32.totalorder %s105, %s106
      %p115 = scmp.eq.s32.totalorder %s22, 0
      %p116 = por %p114, %p115
      %p117 = scmp.ne.s32.totalorder %s105, %s106
      %p118 = scmp.eq.s32.totalorder %s23, 1
      %p119 = por %p117, %p118
      %p121 = scmp.ne.s32.totalorder %s106, %s120
      %p122 = scmp.eq.s32.totalorder %s23, 0
      %p123 = por %p121, %p122
      %s125 = sadd.s32 %s124, 1
      %p128 = scmp.eq.s32.totalorder %s17, 1
      %p129 = scmp.ne.s32.totalorder %s124, %s126
      %p130 = scmp.eq.s32.totalorder %s17, 0
      %p131 = por %p129, %p130
      %p132 = scmp.ne.s32.totalorder %s124, %s126
      %p133 = scmp.eq.s32.totalorder %s22, 1
      %p134 = por %p132, %p133
      %p135 = scmp.ne.s32.totalorder %s126, %s127
      %p136 = scmp.eq.s32.totalorder %s22, 0
      %p137 = por %p135, %p136
      %p138 = scmp.ne.s32.totalorder %s126, %s127
      %p139 = scmp.eq.s32.totalorder %s23, 1
      %p140 = por %p138, %p139
      %p142 = scmp.ne.s32.totalorder %s127, %s141
      %p143 = scmp.eq.s32.totalorder %s23, 0
      %p144 = por %p142, %p143
      %s146 = sadd.s32 %s145, 1
      %p149 = scmp.eq.s32.totalorder %s17, 1
      %p150 = scmp.ne.s32.totalorder %s145, %s147
      %p151 = scmp.eq.s32.totalorder %s17, 0
      %p152 = por %p150, %p151
      %p153 = scmp.ne.s32.totalorder %s145, %s147
      %p154 = scmp.eq.s32.totalorder %s22, 1
      %p155 = por %p153, %p154
      %p156 = scmp.ne.s32.totalorder %s147, %s148
      %p157 = scmp.eq.s32.totalorder %s22, 0
      %p158 = por %p156, %p157
      %p159 = scmp.ne.s32.totalorder %s147, %s148
      %p160 = scmp.eq.s32.totalorder %s23, 1
      %p161 = por %p159, %p160
      %p163 = scmp.ne.s32.totalorder %s148, %s162
      %p164 = scmp.eq.s32.totalorder %s23, 0
      %p165 = por %p163, %p164
      %s167 = sadd.s32 %s166, 1
      %p170 = scmp.eq.s32.totalorder %s17, 1
      %p171 = scmp.ne.s32.totalorder %s166, %s168
      %p172 = scmp.eq.s32.totalorder %s17, 0
      %p173 = por %p171, %p172
      %p174 = scmp.ne.s32.totalorder %s166, %s168
      %p175 = scmp.eq.s32.totalorder %s22, 1
      %p176 = por %p174, %p175
      %p177 = scmp.ne.s32.totalorder %s168, %s169
      %p178 = scmp.eq.s32.totalorder %s22, 0
      %p179 = por %p177, %p178
      %p180 = scmp.ne.s32.totalorder %s168, %s169
      %p181 = scmp.eq.s32.totalorder %s23, 1
      %p182 = por %p180, %p181
      %p184 = scmp.ne.s32.totalorder %s169, %s183
      %p185 = scmp.eq.s32.totalorder %s23, 0
      %p186 = por %p184, %p185
      %s188 = sadd.s32 %s187, 1
      %p191 = scmp.eq.s32.totalorder %s17, 1
      %p192 = scmp.ne.s32.totalorder %s187, %s189
      %p193 = scmp.eq.s32.totalorder %s17, 0
      %p194 = por %p192, %p193
      %p195 = scmp.ne.s32.totalorder %s187, %s189
      %p196 = scmp.eq.s32.totalorder %s22, 1
      %p197 = por %p195, %p196
      %p198 = scmp.ne.s32.totalorder %s189, %s190
      %p199 = scmp.eq.s32.totalorder %s22, 0
      %p200 = por %p198, %p199
      %p201 = scmp.ne.s32.totalorder %s189, %s190
      %p202 = scmp.eq.s32.totalorder %s23, 1
      %p203 = por %p201, %p202
      %p205 = scmp.ne.s32.totalorder %s190, %s204
      %p206 = scmp.eq.s32.totalorder %s23, 0
      %p207 = por %p205, %p206
      %s208 = ssub.s32 %s17, %s24
      %p209 = scmp.eq.s32.totalorder %s208, 0
      %s211 = sadd.s32 %s210, 1
      %s212 = scalar_select %p209, %s210, %s211
      %p215 = pneg %p209
      %p216 = scmp.eq.s32.totalorder %s17, 1
      %p217 = por %p215, %p216
      %p218 = scmp.ne.s32.totalorder %s210, %s213
      %p219 = scmp.eq.s32.totalorder %s17, 0
      %p220 = por %p218, %p219
      %p221 = scmp.ne.s32.totalorder %s210, %s213
      %p222 = scmp.eq.s32.totalorder %s22, 1
      %p223 = por %p221, %p222
      %p224 = scmp.ne.s32.totalorder %s213, %s214
      %p225 = scmp.eq.s32.totalorder %s22, 0
      %p226 = por %p224, %p225
      %p227 = scmp.ne.s32.totalorder %s213, %s214
      %p228 = scmp.eq.s32.totalorder %s23, 1
      %p229 = por %p227, %p228
      %p231 = scmp.ne.s32.totalorder %s214, %s230
      %p232 = scmp.eq.s32.totalorder %s23, 0
      %p233 = por %p231, %p232
      %p234 = scmp.le.s32.totalorder 1, %s17
      %p235 = scmp.lt.s32.totalorder %s17, 3
      %p236 = pnand %p234, %p235
      %p237 = pneg %p236
      // Predicated region
      $region9: #{tpu_custom_call.1} parent=5 // pred_check
        _
      $region10: #{tpu_custom_call.1} parent=5 // pred_check_branch
        %239 = sbr.rel (%p236) target = $region12
      $region11: #{tpu_custom_call.1} parent=5 // pred_region
        %s240 = ssub.s32 %s17, 1
        // Predicated region
        $region13: #{tpu_custom_call.1} parent=11 // pred_check
          %p241 = pneg %p116
        $region14: #{tpu_custom_call.1} parent=11 // pred_check_branch
          %243 = sbr.rel (%p241) target = $region16
        $region15: #{tpu_custom_call.1} parent=11 // pred_region
          _
        $region16: #{tpu_custom_call.1} parent=11 // pred_fallthru
          _
        // Predicated region
        $region17: #{tpu_custom_call.1} parent=11 // pred_check
          %p244 = pneg %p137
        $region18: #{tpu_custom_call.1} parent=11 // pred_check_branch
          %246 = sbr.rel (%p244) target = $region20
        $region19: #{tpu_custom_call.1} parent=11 // pred_region
          _
        $region20: #{tpu_custom_call.1} parent=11 // pred_fallthru
          _
        // Predicated region
        $region21: #{tpu_custom_call.1} parent=11 // pred_check
          %p247 = pneg %p158
        $region22: #{tpu_custom_call.1} parent=11 // pred_check_branch
          %249 = sbr.rel (%p247) target = $region24
        $region23: #{tpu_custom_call.1} parent=11 // pred_region
          _
        $region24: #{tpu_custom_call.1} parent=11 // pred_fallthru
          _
        // Predicated region
        $region25: #{tpu_custom_call.1} parent=11 // pred_check
          %p250 = pneg %p179
        $region26: #{tpu_custom_call.1} parent=11 // pred_check_branch
          %252 = sbr.rel (%p250) target = $region28
        $region27: #{tpu_custom_call.1} parent=11 // pred_region
          _
        $region28: #{tpu_custom_call.1} parent=11 // pred_fallthru
          _
        // Predicated region
        $region29: #{tpu_custom_call.1} parent=11 // pred_check
          %p253 = pneg %p200
        $region30: #{tpu_custom_call.1} parent=11 // pred_check_branch
          %255 = sbr.rel (%p253) target = $region32
        $region31: #{tpu_custom_call.1} parent=11 // pred_region
          _
        $region32: #{tpu_custom_call.1} parent=11 // pred_fallthru
          _
      $region12: #{tpu_custom_call.1} parent=5 // pred_fallthru
        _
      %p256 = scmp.lt.s32.totalorder %s17, 2
      // Predicated region
      $region33: #{tpu_custom_call.1} parent=5 // pred_check
        %p257 = pneg %p256
      $region34: #{tpu_custom_call.1} parent=5 // pred_check_branch
        %259 = sbr.rel (%p257) target = $region36
      $region35: #{tpu_custom_call.1} parent=5 // pred_region
        // Predicated region
        $region37: #{tpu_custom_call.1} parent=35 // pred_check
          %p260 = pneg %p37
        $region38: #{tpu_custom_call.1} parent=35 // pred_check_branch
          %262 = sbr.rel (%p260) target = $region40
        $region39: #{tpu_custom_call.1} parent=35 // pred_region
          %s263 = smul.u32 4, %s17
          %p264 = scmp.lt.s32.totalorder %s263, 7
          %s265 = scalar_select %p264, %s263, 7
          %s266 = smul.addr %s265, 8
          %s267 = scalar_lea.vmem %s0, %s266
          %s268 = smul.u32 4, %s17
        $region40: #{tpu_custom_call.1} parent=35 // pred_fallthru
          _
        // Predicated region
        $region41: #{tpu_custom_call.1} parent=35 // pred_check
          %p269 = pneg %p63
        $region42: #{tpu_custom_call.1} parent=35 // pred_check_branch
          %271 = sbr.rel (%p269) target = $region44
        $region43: #{tpu_custom_call.1} parent=35 // pred_region
          %s272 = smul.u32 4, %s17
          %p273 = scmp.lt.s32.totalorder %s272, 7
          %s274 = scalar_select %p273, %s272, 7
          %s275 = smul.addr %s274, 8
          %s276 = scalar_lea.vmem %s1, %s275
          %s277 = smul.u32 4, %s17
        $region44: #{tpu_custom_call.1} parent=35 // pred_fallthru
          _
        // Predicated region
        $region45: #{tpu_custom_call.1} parent=35 // pred_check
          %p278 = pneg %p89
        $region46: #{tpu_custom_call.1} parent=35 // pred_check_branch
          %280 = sbr.rel (%p278) target = $region48
        $region47: #{tpu_custom_call.1} parent=35 // pred_region
          %s281 = smul.u32 4, %s17
          %p282 = scmp.lt.s32.totalorder %s281, 7
          %s283 = scalar_select %p282, %s281, 7
          %s284 = smul.addr %s283, 8
          %s285 = scalar_lea.vmem %s2, %s284
          %s286 = smul.u32 4, %s17
        $region48: #{tpu_custom_call.1} parent=35 // pred_fallthru
          _
      $region36: #{tpu_custom_call.1} parent=5 // pred_fallthru
        _
      %p287 = scmp.le.s32.totalorder 1, %s17
      %p288 = scmp.lt.s32.totalorder %s17, 3
      %p289 = pnand %p287, %p288
      %p290 = pneg %p289
      // Predicated region
      $region49: #{tpu_custom_call.1} parent=5 // pred_check
        _
      $region50: #{tpu_custom_call.1} parent=5 // pred_check_branch
        %292 = sbr.rel (%p289) target = $region52
      $region51: #{tpu_custom_call.1} parent=5 // pred_region
        %s293 = ssub.s32 %s17, 1
        %s294 = smul.u32 4, %s22
        %p295 = scmp.lt.s32.totalorder %s294, 7
        %s296 = scalar_select %p295, %s294, 7
        %s297 = smul.addr %s296, 8
        %s298 = scalar_lea.vmem %s0, %s297
        %p299 = pneg %p43
        %p300 = pneg %p40
        %s301 = smul.u32 4, %s22
        %p302 = scmp.lt.s32.totalorder %s301, 7
        %s303 = scalar_select %p302, %s301, 7
        %s304 = smul.addr %s303, 8
        %s305 = scalar_lea.vmem %s1, %s304
        %p306 = pneg %p69
        %p307 = pneg %p66
        %s308 = smul.u32 4, %s22
        %p309 = scmp.lt.s32.totalorder %s308, 7
        %s310 = scalar_select %p309, %s308, 7
        %s311 = smul.addr %s310, 8
        %s312 = scalar_lea.vmem %s2, %s311
        %p313 = pneg %p95
        %p314 = pneg %p92
        %p315 = pneg %p116
        %p316 = pneg %p113
        %p317 = pneg %p137
        %p318 = pneg %p134
        %p319 = pneg %p158
        %p320 = pneg %p155
        %p321 = pneg %p179
        %p322 = pneg %p176
        %p323 = pneg %p200
        %p324 = pneg %p197
        %p325 = pneg %p226
        %p326 = pneg %p223
        %s327 = sand.u32 %s213, 1
        %s328 = scalar_lea.sflag [#allocation3], %s327
        %s329 = sand.u32 %s213, 1
        %s330 = smul.addr %s329, 32
        %s331 = scalar_lea.vmem [#allocation2], %s330
        %s332 = smul.u32 4, %s22
        %p333 = scmp.lt.s32.totalorder %s332, 7
        %s334 = scalar_select %p333, %s332, 7
        %s335 = smul.addr %s334, 8
        %s336 = scalar_lea.vmem %s0, %s335
        %s337 = smul.u32 4, %s22
        %s338 = smul.u32 4, %s22
        %p339 = scmp.lt.s32.totalorder %s338, 7
        %s340 = scalar_select %p339, %s338, 7
        %s341 = smul.addr %s340, 8
        %s342 = scalar_lea.vmem %s1, %s341
        %s343 = smul.u32 4, %s22
        %s344 = smul.u32 4, %s22
        %p345 = scmp.lt.s32.totalorder %s344, 7
        %s346 = scalar_select %p345, %s344, 7
        %s347 = smul.addr %s346, 8
        %s348 = scalar_lea.vmem %s2, %s347
        %s349 = smul.u32 4, %s22
        %s350 = smul.u32 4, %s22
        %v352 = vld [vmem:[%s336] sm:$0xff]
        %v353 = vld [vmem:[%s336 + $0x8] sm:$0xff]
        %v354 = vld [vmem:[%s336 + $0x10] sm:$0xff]
        %v355 = vld [vmem:[%s336 + $0x18] sm:$0xff]
        %v356 = vpack.c.bf16 %v352, %v352
        %v357 = vpack.c.bf16 %v353, %v353
        %v358 = vpack.c.bf16 %v354, %v354
        %v359 = vpack.c.bf16 %v355, %v355
        %v360 = vld [vmem:[%s342] sm:$0xff]
        %v361 = vld [vmem:[%s342 + $0x8] sm:$0xff]
        %v362 = vld [vmem:[%s342 + $0x10] sm:$0xff]
        %v363 = vld [vmem:[%s342 + $0x18] sm:$0xff]
        %v364 = vpack.c.bf16 %v360, %v360
        %v365 = vpack.c.bf16 %v361, %v361
        %v366 = vpack.c.bf16 %v362, %v362
        %v367 = vpack.c.bf16 %v363, %v363
        %v368 = vld [vmem:[%s348] sm:$0xff]
        %v369 = vld [vmem:[%s348 + $0x8] sm:$0xff]
        %v370 = vld [vmem:[%s348 + $0x10] sm:$0xff]
        %v371 = vld [vmem:[%s348 + $0x18] sm:$0xff]
        %v372 = vpack.c.bf16 %v368, %v368
        %v373 = vpack.c.bf16 %v369, %v369
        %v374 = vpack.c.bf16 %v370, %v370
        %v375 = vpack.c.bf16 %v371, %v371
        %v376 = vld [vmem:[%s3] sm:$0xf]
        %v377 = vld [vmem:[%s3 + $0x4] sm:$0xf]
        %v378 = vld [vmem:[%s3 + $0x8] sm:$0xf]
        %v379 = vld [vmem:[%s3 + $0xc] sm:$0xf]
        %v380 = vld [vmem:[%s4] sm:$0xf]
        %v381 = vld [vmem:[%s4 + $0x4] sm:$0xf]
        %v382 = vld [vmem:[%s4 + $0x8] sm:$0xf]
        %v383 = vld [vmem:[%s4 + $0xc] sm:$0xf]
        %v384 = vld [vmem:[%s5] sm:$0xf]
        %v385 = vld [vmem:[%s5 + $0x4] sm:$0xf]
        %v386 = vld [vmem:[%s5 + $0x8] sm:$0xf]
        %v387 = vld [vmem:[%s5 + $0xc] sm:$0xf]
        %v388 = vld [vmem:[%s6] sm:$0xf]
        %v393 = vunpack.c.l.b16 %v376
        %v394 = vunpack.c.l.b16 %v377
        %v395 = vunpack.c.l.b16 %v378
        %v396 = vunpack.c.l.b16 %v379
        %v397 = vpack.c.b16 %v394, %v393
        %v398 = vpack.c.b16 %v396, %v395
        %vm401 = vcmask 261120
        %v403 = vsel %vm401, %v356, 0
        %405 = vmatpush.bf16.msra.mxu0 0
        %406 = vmatpush.bf16.msra.mxu0 0
        %407 = vmatpush.bf16.msra.mxu0 0
        %408 = vmatpush.bf16.msra.mxu0 0
        %409 = vmatpush.bf16.msra.mxu0 0
        %410 = vmatpush.bf16.msra.mxu0 0
        %411 = vmatpush.bf16.msra.mxu0 %v398
        %412 = vmatpush.bf16.msra.mxu0 %v397
        %413 = vmatmul.bf16.gmra.mxu0 %v403
        %v414 = vpop.f32.mrf.mxu0
        %v415 = vadd.f32 0.0, %v414
        %v416 = vpop.f32.mrf.mxu0
        %417 = vdwg.mxu0
        %v419 = vsel %vm401, %v357, 0
        %421 = vmatpush.bf16.msra.mxu0 0
        %422 = vmatpush.bf16.msra.mxu0 0
        %423 = vmatpush.bf16.msra.mxu0 0
        %424 = vmatpush.bf16.msra.mxu0 0
        %425 = vmatpush.bf16.msra.mxu0 0
        %426 = vmatpush.bf16.msra.mxu0 0
        %427 = vmatpush.bf16.msra.mxu0 %v398
        %428 = vmatpush.bf16.msra.mxu0 %v397
        %429 = vmatmul.bf16.gmra.mxu0 %v419
        %v430 = vpop.f32.mrf.mxu0
        %v431 = vadd.f32 0.0, %v430
        %v432 = vpop.f32.mrf.mxu0
        %433 = vdwg.mxu0
        %v435 = vsel %vm401, %v358, 0
        %437 = vmatpush.bf16.msra.mxu0 0
        %438 = vmatpush.bf16.msra.mxu0 0
        %439 = vmatpush.bf16.msra.mxu0 0
        %440 = vmatpush.bf16.msra.mxu0 0
        %441 = vmatpush.bf16.msra.mxu0 0
        %442 = vmatpush.bf16.msra.mxu0 0
        %443 = vmatpush.bf16.msra.mxu0 %v398
        %444 = vmatpush.bf16.msra.mxu0 %v397
        %445 = vmatmul.bf16.gmra.mxu0 %v435
        %v446 = vpop.f32.mrf.mxu0
        %v447 = vadd.f32 0.0, %v446
        %v448 = vpop.f32.mrf.mxu0
        %449 = vdwg.mxu0
        %v451 = vsel %vm401, %v359, 0
        %453 = vmatpush.bf16.msra.mxu0 0
        %454 = vmatpush.bf16.msra.mxu0 0
        %455 = vmatpush.bf16.msra.mxu0 0
        %456 = vmatpush.bf16.msra.mxu0 0
        %457 = vmatpush.bf16.msra.mxu0 0
        %458 = vmatpush.bf16.msra.mxu0 0
        %459 = vmatpush.bf16.msra.mxu0 %v398
        %460 = vmatpush.bf16.msra.mxu0 %v397
        %461 = vmatmul.bf16.gmra.mxu0 %v451
        %v462 = vpop.f32.mrf.mxu0
        %v463 = vadd.f32 0.0, %v462
        %v464 = vpop.f32.mrf.mxu0
        %465 = vdwg.mxu0
        %v470 = vunpack.c.l.b16 %v380
        %v471 = vunpack.c.l.b16 %v381
        %v472 = vunpack.c.l.b16 %v382
        %v473 = vunpack.c.l.b16 %v383
        %v474 = vpack.c.b16 %v471, %v470
        %v475 = vpack.c.b16 %v473, %v472
        %v479 = vsel %vm401, %v364, 0
        %481 = vmatpush.bf16.msra.mxu0 0
        %482 = vmatpush.bf16.msra.mxu0 0
        %483 = vmatpush.bf16.msra.mxu0 0
        %484 = vmatpush.bf16.msra.mxu0 0
        %485 = vmatpush.bf16.msra.mxu0 0
        %486 = vmatpush.bf16.msra.mxu0 0
        %487 = vmatpush.bf16.msra.mxu0 %v475
        %488 = vmatpush.bf16.msra.mxu0 %v474
        %489 = vmatmul.bf16.gmra.mxu0 %v479
        %v490 = vpop.f32.mrf.mxu0
        %v491 = vadd.f32 0.0, %v490
        %v492 = vpop.f32.mrf.mxu0
        %493 = vdwg.mxu0
        %v495 = vsel %vm401, %v365, 0
        %497 = vmatpush.bf16.msra.mxu0 0
        %498 = vmatpush.bf16.msra.mxu0 0
        %499 = vmatpush.bf16.msra.mxu0 0
        %500 = vmatpush.bf16.msra.mxu0 0
        %501 = vmatpush.bf16.msra.mxu0 0
        %502 = vmatpush.bf16.msra.mxu0 0
        %503 = vmatpush.bf16.msra.mxu0 %v475
        %504 = vmatpush.bf16.msra.mxu0 %v474
        %505 = vmatmul.bf16.gmra.mxu0 %v495
        %v506 = vpop.f32.mrf.mxu0
        %v507 = vadd.f32 0.0, %v506
        %v508 = vpop.f32.mrf.mxu0
        %509 = vdwg.mxu0
        %v511 = vsel %vm401, %v366, 0
        %513 = vmatpush.bf16.msra.mxu0 0
        %514 = vmatpush.bf16.msra.mxu0 0
        %515 = vmatpush.bf16.msra.mxu0 0
        %516 = vmatpush.bf16.msra.mxu0 0
        %517 = vmatpush.bf16.msra.mxu0 0
        %518 = vmatpush.bf16.msra.mxu0 0
        %519 = vmatpush.bf16.msra.mxu0 %v475
        %520 = vmatpush.bf16.msra.mxu0 %v474
        %521 = vmatmul.bf16.gmra.mxu0 %v511
        %v522 = vpop.f32.mrf.mxu0
        %v523 = vadd.f32 0.0, %v522
        %v524 = vpop.f32.mrf.mxu0
        %525 = vdwg.mxu0
        %v527 = vsel %vm401, %v367, 0
        %529 = vmatpush.bf16.msra.mxu0 0
        %530 = vmatpush.bf16.msra.mxu0 0
        %531 = vmatpush.bf16.msra.mxu0 0
        %532 = vmatpush.bf16.msra.mxu0 0
        %533 = vmatpush.bf16.msra.mxu0 0
        %534 = vmatpush.bf16.msra.mxu0 0
        %535 = vmatpush.bf16.msra.mxu0 %v475
        %536 = vmatpush.bf16.msra.mxu0 %v474
        %537 = vmatmul.bf16.gmra.mxu0 %v527
        %v538 = vpop.f32.mrf.mxu0
        %v539 = vadd.f32 0.0, %v538
        %v540 = vpop.f32.mrf.mxu0
        %541 = vdwg.mxu0
        %v546 = vunpack.c.l.b16 %v384
        %v547 = vunpack.c.l.b16 %v385
        %v548 = vunpack.c.l.b16 %v386
        %v549 = vunpack.c.l.b16 %v387
        %v550 = vpack.c.b16 %v547, %v546
        %v551 = vpack.c.b16 %v549, %v548
        %v555 = vsel %vm401, %v372, 0
        %557 = vmatpush.bf16.msra.mxu0 0
        %558 = vmatpush.bf16.msra.mxu0 0
        %559 = vmatpush.bf16.msra.mxu0 0
        %560 = vmatpush.bf16.msra.mxu0 0
        %561 = vmatpush.bf16.msra.mxu0 0
        %562 = vmatpush.bf16.msra.mxu0 0
        %563 = vmatpush.bf16.msra.mxu0 %v551
        %564 = vmatpush.bf16.msra.mxu0 %v550
        %565 = vmatmul.bf16.gmra.mxu0 %v555
        %v566 = vpop.f32.mrf.mxu0
        %v567 = vadd.f32 0.0, %v566
        %v568 = vpop.f32.mrf.mxu0
        %569 = vdwg.mxu0
        %v571 = vsel %vm401, %v373, 0
        %573 = vmatpush.bf16.msra.mxu0 0
        %574 = vmatpush.bf16.msra.mxu0 0
        %575 = vmatpush.bf16.msra.mxu0 0
        %576 = vmatpush.bf16.msra.mxu0 0
        %577 = vmatpush.bf16.msra.mxu0 0
        %578 = vmatpush.bf16.msra.mxu0 0
        %579 = vmatpush.bf16.msra.mxu0 %v551
        %580 = vmatpush.bf16.msra.mxu0 %v550
        %581 = vmatmul.bf16.gmra.mxu0 %v571
        %v582 = vpop.f32.mrf.mxu0
        %v583 = vadd.f32 0.0, %v582
        %v584 = vpop.f32.mrf.mxu0
        %585 = vdwg.mxu0
        %v587 = vsel %vm401, %v374, 0
        %589 = vmatpush.bf16.msra.mxu0 0
        %590 = vmatpush.bf16.msra.mxu0 0
        %591 = vmatpush.bf16.msra.mxu0 0
        %592 = vmatpush.bf16.msra.mxu0 0
        %593 = vmatpush.bf16.msra.mxu0 0
        %594 = vmatpush.bf16.msra.mxu0 0
        %595 = vmatpush.bf16.msra.mxu0 %v551
        %596 = vmatpush.bf16.msra.mxu0 %v550
        %597 = vmatmul.bf16.gmra.mxu0 %v587
        %v598 = vpop.f32.mrf.mxu0
        %v599 = vadd.f32 0.0, %v598
        %v600 = vpop.f32.mrf.mxu0
        %601 = vdwg.mxu0
        %v603 = vsel %vm401, %v375, 0
        %605 = vmatpush.bf16.msra.mxu0 0
        %606 = vmatpush.bf16.msra.mxu0 0
        %607 = vmatpush.bf16.msra.mxu0 0
        %608 = vmatpush.bf16.msra.mxu0 0
        %609 = vmatpush.bf16.msra.mxu0 0
        %610 = vmatpush.bf16.msra.mxu0 0
        %611 = vmatpush.bf16.msra.mxu0 %v551
        %612 = vmatpush.bf16.msra.mxu0 %v550
        %613 = vmatmul.bf16.gmra.mxu0 %v603
        %v614 = vpop.f32.mrf.mxu0
        %v615 = vadd.f32 0.0, %v614
        %v616 = vpop.f32.mrf.mxu0
        %617 = vdwg.mxu0
        %v618 = vpack.c.bf16 %v415, %v415
        %v619 = vpack.c.bf16 %v431, %v431
        %v620 = vpack.c.bf16 %v447, %v447
        %v621 = vpack.c.bf16 %v463, %v463
        %v622 = vpack.c.bf16 %v491, %v491
        %v623 = vpack.c.bf16 %v507, %v507
        %v624 = vpack.c.bf16 %v523, %v523
        %v625 = vpack.c.bf16 %v539, %v539
        %vm626 = vcmask 64512
        %v628 = vsel %vm626, %v618, 0
        %v631 = vsel %vm626, %v622, 0
        %633 = vmatpush.bf16.xpose.msra.mxu0 0
        %634 = vmatpush.bf16.xpose.msra.mxu0 0
        %635 = vmatpush.bf16.xpose.msra.mxu0 0
        %636 = vmatpush.bf16.xpose.msra.mxu0 0
        %637 = vmatpush.bf16.xpose.msra.mxu0 0
        %638 = vmatpush.bf16.xpose.msra.mxu0 0
        %639 = vmatpush.bf16.xpose.msra.mxu0 0
        %640 = vmatpush.bf16.xpose.msra.mxu0 %v631
        %641 = vmatmul.bf16.gmra.mxu0 %v628
        %v642 = vpop.f32.mrf.mxu0
        %v643 = vadd.f32 0.0, %v642
        %v644 = vpop.f32.mrf.mxu0
        %645 = vdwg.mxu0
        %v647 = vsel %vm626, %v619, 0
        %v650 = vsel %vm626, %v623, 0
        %652 = vmatpush.bf16.xpose.msra.mxu0 0
        %653 = vmatpush.bf16.xpose.msra.mxu0 0
        %654 = vmatpush.bf16.xpose.msra.mxu0 0
        %655 = vmatpush.bf16.xpose.msra.mxu0 0
        %656 = vmatpush.bf16.xpose.msra.mxu0 0
        %657 = vmatpush.bf16.xpose.msra.mxu0 0
        %658 = vmatpush.bf16.xpose.msra.mxu0 0
        %659 = vmatpush.bf16.xpose.msra.mxu0 %v650
        %660 = vmatmul.bf16.gmra.mxu0 %v647
        %v661 = vpop.f32.mrf.mxu0
        %v662 = vadd.f32 0.0, %v661
        %v663 = vpop.f32.mrf.mxu0
        %664 = vdwg.mxu0
        %v666 = vsel %vm626, %v620, 0
        %v669 = vsel %vm626, %v624, 0
        %671 = vmatpush.bf16.xpose.msra.mxu0 0
        %672 = vmatpush.bf16.xpose.msra.mxu0 0
        %673 = vmatpush.bf16.xpose.msra.mxu0 0
        %674 = vmatpush.bf16.xpose.msra.mxu0 0
        %675 = vmatpush.bf16.xpose.msra.mxu0 0
        %676 = vmatpush.bf16.xpose.msra.mxu0 0
        %677 = vmatpush.bf16.xpose.msra.mxu0 0
        %678 = vmatpush.bf16.xpose.msra.mxu0 %v669
        %679 = vmatmul.bf16.gmra.mxu0 %v666
        %v680 = vpop.f32.mrf.mxu0
        %v681 = vadd.f32 0.0, %v680
        %v682 = vpop.f32.mrf.mxu0
        %683 = vdwg.mxu0
        %v685 = vsel %vm626, %v621, 0
        %v688 = vsel %vm626, %v625, 0
        %690 = vmatpush.bf16.xpose.msra.mxu0 0
        %691 = vmatpush.bf16.xpose.msra.mxu0 0
        %692 = vmatpush.bf16.xpose.msra.mxu0 0
        %693 = vmatpush.bf16.xpose.msra.mxu0 0
        %694 = vmatpush.bf16.xpose.msra.mxu0 0
        %695 = vmatpush.bf16.xpose.msra.mxu0 0
        %696 = vmatpush.bf16.xpose.msra.mxu0 0
        %697 = vmatpush.bf16.xpose.msra.mxu0 %v688
        %698 = vmatmul.bf16.gmra.mxu0 %v685
        %v699 = vpop.f32.mrf.mxu0
        %v700 = vadd.f32 0.0, %v699
        %v701 = vpop.f32.mrf.mxu0
        %702 = vdwg.mxu0
        %v703 = vsel %vm626, %v643, -inf
        %704 = vmax.xlane.f32.xlu0 %v703
        %v705 = vpop.xlane.xlu0 %704
        %v706 = vsel %vm626, %v662, -inf
        %707 = vmax.xlane.f32.xlu0 %v706
        %v708 = vpop.xlane.xlu0 %707
        %v709 = vsel %vm626, %v681, -inf
        %710 = vmax.xlane.f32.xlu0 %v709
        %v711 = vpop.xlane.xlu0 %710
        %v712 = vsel %vm626, %v700, -inf
        %713 = vmax.xlane.f32.xlu0 %v712
        %v714 = vpop.xlane.xlu0 %713
        %v715 = vsub.f32 %v643, %v705
        %v716 = vsub.f32 %v662, %v708
        %v717 = vsub.f32 %v681, %v711
        %v718 = vsub.f32 %v700, %v714
        %v719 = vmul.f32 %v715, 1.442695
        %v720 = vpow.pop %v719
        %v721 = vmul.f32 %v716, 1.442695
        %v722 = vpow.pop %v721
        %v723 = vmul.f32 %v717, 1.442695
        %v724 = vpow.pop %v723
        %v725 = vmul.f32 %v718, 1.442695
        %v726 = vpow.pop %v725
        %v727 = vsel %vm626, %v720, 0.0
        %728 = vadd.xlane.f32.xlu0 %v727
        %v729 = vpop.xlane.xlu0 %728
        %v730 = vsel %vm626, %v722, 0.0
        %731 = vadd.xlane.f32.xlu0 %v730
        %v732 = vpop.xlane.xlu0 %731
        %v733 = vsel %vm626, %v724, 0.0
        %734 = vadd.xlane.f32.xlu0 %v733
        %v735 = vpop.xlane.xlu0 %734
        %v736 = vsel %vm626, %v726, 0.0
        %737 = vadd.xlane.f32.xlu0 %v736
        %v738 = vpop.xlane.xlu0 %737
        %v739 = vrcp.pop %v729
        %v740 = vrcp.pop %v732
        %v741 = vrcp.pop %v735
        %v742 = vrcp.pop %v738
        %v743 = vmul.f32 %v720, %v739
        %v744 = vmul.f32 %v722, %v740
        %v745 = vmul.f32 %v724, %v741
        %v746 = vmul.f32 %v726, %v742
        %v747 = vpack.c.bf16 %v743, %v743
        %v748 = vpack.c.bf16 %v744, %v744
        %v749 = vpack.c.bf16 %v745, %v745
        %v750 = vpack.c.bf16 %v746, %v746
        %v751 = vpack.c.bf16 %v567, %v567
        %v752 = vpack.c.bf16 %v583, %v583
        %v753 = vpack.c.bf16 %v599, %v599
        %v754 = vpack.c.bf16 %v615, %v615
        %v756 = vsel %vm626, %v747, 0
        %vm758 = vcmask 1043456
        %v760 = vsel %vm758, %v751, 0
        %762 = vmatpush.bf16.msra.mxu0 0
        %763 = vmatpush.bf16.msra.mxu0 0
        %764 = vmatpush.bf16.msra.mxu0 0
        %765 = vmatpush.bf16.msra.mxu0 0
        %766 = vmatpush.bf16.msra.mxu0 0
        %767 = vmatpush.bf16.msra.mxu0 0
        %768 = vmatpush.bf16.msra.mxu0 0
        %769 = vmatpush.bf16.msra.mxu0 %v760
        %770 = vmatmul.bf16.gmra.mxu0 %v756
        %v771 = vpop.f32.mrf.mxu0
        %v772 = vadd.f32 0.0, %v771
        %v773 = vpop.f32.mrf.mxu0
        %774 = vdwg.mxu0
        %v776 = vsel %vm626, %v748, 0
        %v779 = vsel %vm758, %v752, 0
        %781 = vmatpush.bf16.msra.mxu0 0
        %782 = vmatpush.bf16.msra.mxu0 0
        %783 = vmatpush.bf16.msra.mxu0 0
        %784 = vmatpush.bf16.msra.mxu0 0
        %785 = vmatpush.bf16.msra.mxu0 0
        %786 = vmatpush.bf16.msra.mxu0 0
        %787 = vmatpush.bf16.msra.mxu0 0
        %788 = vmatpush.bf16.msra.mxu0 %v779
        %789 = vmatmul.bf16.gmra.mxu0 %v776
        %v790 = vpop.f32.mrf.mxu0
        %v791 = vadd.f32 0.0, %v790
        %v792 = vpop.f32.mrf.mxu0
        %793 = vdwg.mxu0
        %v795 = vsel %vm626, %v749, 0
        %v798 = vsel %vm758, %v753, 0
        %800 = vmatpush.bf16.msra.mxu0 0
        %801 = vmatpush.bf16.msra.mxu0 0
        %802 = vmatpush.bf16.msra.mxu0 0
        %803 = vmatpush.bf16.msra.mxu0 0
        %804 = vmatpush.bf16.msra.mxu0 0
        %805 = vmatpush.bf16.msra.mxu0 0
        %806 = vmatpush.bf16.msra.mxu0 0
        %807 = vmatpush.bf16.msra.mxu0 %v798
        %808 = vmatmul.bf16.gmra.mxu0 %v795
        %v809 = vpop.f32.mrf.mxu0
        %v810 = vadd.f32 0.0, %v809
        %v811 = vpop.f32.mrf.mxu0
        %812 = vdwg.mxu0
        %v814 = vsel %vm626, %v750, 0
        %v817 = vsel %vm758, %v754, 0
        %819 = vmatpush.bf16.msra.mxu0 0
        %820 = vmatpush.bf16.msra.mxu0 0
        %821 = vmatpush.bf16.msra.mxu0 0
        %822 = vmatpush.bf16.msra.mxu0 0
        %823 = vmatpush.bf16.msra.mxu0 0
        %824 = vmatpush.bf16.msra.mxu0 0
        %825 = vmatpush.bf16.msra.mxu0 0
        %826 = vmatpush.bf16.msra.mxu0 %v817
        %827 = vmatmul.bf16.gmra.mxu0 %v814
        %v828 = vpop.f32.mrf.mxu0
        %v829 = vadd.f32 0.0, %v828
        %v830 = vpop.f32.mrf.mxu0
        %831 = vdwg.mxu0
        %v832 = vpack.c.bf16 %v772, %v772
        %v833 = vpack.c.bf16 %v791, %v791
        %v834 = vpack.c.bf16 %v810, %v810
        %v835 = vpack.c.bf16 %v829, %v829
        %s836 = scalar_lea.vmem %s3, 16
        %v837 = vld [vmem:[%s836] sm:$0xf]
        %v838 = vld [vmem:[%s836 + $0x4] sm:$0xf]
        %v839 = vld [vmem:[%s836 + $0x8] sm:$0xf]
        %v840 = vld [vmem:[%s836 + $0xc] sm:$0xf]
        %s841 = scalar_lea.vmem %s4, 16
        %v842 = vld [vmem:[%s841] sm:$0xf]
        %v843 = vld [vmem:[%s841 + $0x4] sm:$0xf]
        %v844 = vld [vmem:[%s841 + $0x8] sm:$0xf]
        %v845 = vld [vmem:[%s841 + $0xc] sm:$0xf]
        %s846 = scalar_lea.vmem %s5, 16
        %v847 = vld [vmem:[%s846] sm:$0xf]
        %v848 = vld [vmem:[%s846 + $0x4] sm:$0xf]
        %v849 = vld [vmem:[%s846 + $0x8] sm:$0xf]
        %v850 = vld [vmem:[%s846 + $0xc] sm:$0xf]
        %s851 = scalar_lea.vmem %s6, 4
        %v852 = vld [vmem:[%s851] sm:$0xf]
        %v857 = vunpack.c.l.b16 %v837
        %v858 = vunpack.c.l.b16 %v838
        %v859 = vunpack.c.l.b16 %v839
        %v860 = vunpack.c.l.b16 %v840
        %v861 = vpack.c.b16 %v858, %v857
        %v862 = vpack.c.b16 %v860, %v859
        %865 = vmatpush.bf16.msra.mxu0 0
        %866 = vmatpush.bf16.msra.mxu0 0
        %867 = vmatpush.bf16.msra.mxu0 0
        %868 = vmatpush.bf16.msra.mxu0 0
        %869 = vmatpush.bf16.msra.mxu0 0
        %870 = vmatpush.bf16.msra.mxu0 0
        %871 = vmatpush.bf16.msra.mxu0 %v862
        %872 = vmatpush.bf16.msra.mxu0 %v861
        %873 = vmatmul.bf16.gmra.mxu0 %v403
        %v874 = vpop.f32.mrf.mxu0
        %v875 = vadd.f32 0.0, %v874
        %v876 = vpop.f32.mrf.mxu0
        %877 = vdwg.mxu0
        %878 = vmatpush.bf16.msra.mxu0 0
        %879 = vmatpush.bf16.msra.mxu0 0
        %880 = vmatpush.bf16.msra.mxu0 0
        %881 = vmatpush.bf16.msra.mxu0 0
        %882 = vmatpush.bf16.msra.mxu0 0
        %883 = vmatpush.bf16.msra.mxu0 0
        %884 = vmatpush.bf16.msra.mxu0 %v862
        %885 = vmatpush.bf16.msra.mxu0 %v861
        %886 = vmatmul.bf16.gmra.mxu0 %v419
        %v887 = vpop.f32.mrf.mxu0
        %v888 = vadd.f32 0.0, %v887
        %v889 = vpop.f32.mrf.mxu0
        %890 = vdwg.mxu0
        %891 = vmatpush.bf16.msra.mxu0 0
        %892 = vmatpush.bf16.msra.mxu0 0
        %893 = vmatpush.bf16.msra.mxu0 0
        %894 = vmatpush.bf16.msra.mxu0 0
        %895 = vmatpush.bf16.msra.mxu0 0
        %896 = vmatpush.bf16.msra.mxu0 0
        %897 = vmatpush.bf16.msra.mxu0 %v862
        %898 = vmatpush.bf16.msra.mxu0 %v861
        %899 = vmatmul.bf16.gmra.mxu0 %v435
        %v900 = vpop.f32.mrf.mxu0
        %v901 = vadd.f32 0.0, %v900
        %v902 = vpop.f32.mrf.mxu0
        %903 = vdwg.mxu0
        %904 = vmatpush.bf16.msra.mxu0 0
        %905 = vmatpush.bf16.msra.mxu0 0
        %906 = vmatpush.bf16.msra.mxu0 0
        %907 = vmatpush.bf16.msra.mxu0 0
        %908 = vmatpush.bf16.msra.mxu0 0
        %909 = vmatpush.bf16.msra.mxu0 0
        %910 = vmatpush.bf16.msra.mxu0 %v862
        %911 = vmatpush.bf16.msra.mxu0 %v861
        %912 = vmatmul.bf16.gmra.mxu0 %v451
        %v913 = vpop.f32.mrf.mxu0
        %v914 = vadd.f32 0.0, %v913
        %v915 = vpop.f32.mrf.mxu0
        %916 = vdwg.mxu0
        %v921 = vunpack.c.l.b16 %v842
        %v922 = vunpack.c.l.b16 %v843
        %v923 = vunpack.c.l.b16 %v844
        %v924 = vunpack.c.l.b16 %v845
        %v925 = vpack.c.b16 %v922, %v921
        %v926 = vpack.c.b16 %v924, %v923
        %929 = vmatpush.bf16.msra.mxu0 0
        %930 = vmatpush.bf16.msra.mxu0 0
        %931 = vmatpush.bf16.msra.mxu0 0
        %932 = vmatpush.bf16.msra.mxu0 0
        %933 = vmatpush.bf16.msra.mxu0 0
        %934 = vmatpush.bf16.msra.mxu0 0
        %935 = vmatpush.bf16.msra.mxu0 %v926
        %936 = vmatpush.bf16.msra.mxu0 %v925
        %937 = vmatmul.bf16.gmra.mxu0 %v479
        %v938 = vpop.f32.mrf.mxu0
        %v939 = vadd.f32 0.0, %v938
        %v940 = vpop.f32.mrf.mxu0
        %941 = vdwg.mxu0
        %942 = vmatpush.bf16.msra.mxu0 0
        %943 = vmatpush.bf16.msra.mxu0 0
        %944 = vmatpush.bf16.msra.mxu0 0
        %945 = vmatpush.bf16.msra.mxu0 0
        %946 = vmatpush.bf16.msra.mxu0 0
        %947 = vmatpush.bf16.msra.mxu0 0
        %948 = vmatpush.bf16.msra.mxu0 %v926
        %949 = vmatpush.bf16.msra.mxu0 %v925
        %950 = vmatmul.bf16.gmra.mxu0 %v495
        %v951 = vpop.f32.mrf.mxu0
        %v952 = vadd.f32 0.0, %v951
        %v953 = vpop.f32.mrf.mxu0
        %954 = vdwg.mxu0
        %955 = vmatpush.bf16.msra.mxu0 0
        %956 = vmatpush.bf16.msra.mxu0 0
        %957 = vmatpush.bf16.msra.mxu0 0
        %958 = vmatpush.bf16.msra.mxu0 0
        %959 = vmatpush.bf16.msra.mxu0 0
        %960 = vmatpush.bf16.msra.mxu0 0
        %961 = vmatpush.bf16.msra.mxu0 %v926
        %962 = vmatpush.bf16.msra.mxu0 %v925
        %963 = vmatmul.bf16.gmra.mxu0 %v511
        %v964 = vpop.f32.mrf.mxu0
        %v965 = vadd.f32 0.0, %v964
        %v966 = vpop.f32.mrf.mxu0
        %967 = vdwg.mxu0
        %968 = vmatpush.bf16.msra.mxu0 0
        %969 = vmatpush.bf16.msra.mxu0 0
        %970 = vmatpush.bf16.msra.mxu0 0
        %971 = vmatpush.bf16.msra.mxu0 0
        %972 = vmatpush.bf16.msra.mxu0 0
        %973 = vmatpush.bf16.msra.mxu0 0
        %974 = vmatpush.bf16.msra.mxu0 %v926
        %975 = vmatpush.bf16.msra.mxu0 %v925
        %976 = vmatmul.bf16.gmra.mxu0 %v527
        %v977 = vpop.f32.mrf.mxu0
        %v978 = vadd.f32 0.0, %v977
        %v979 = vpop.f32.mrf.mxu0
        %980 = vdwg.mxu0
        %v985 = vunpack.c.l.b16 %v847
        %v986 = vunpack.c.l.b16 %v848
        %v987 = vunpack.c.l.b16 %v849
        %v988 = vunpack.c.l.b16 %v850
        %v989 = vpack.c.b16 %v986, %v985
        %v990 = vpack.c.b16 %v988, %v987
        %993 = vmatpush.bf16.msra.mxu0 0
        %994 = vmatpush.bf16.msra.mxu0 0
        %995 = vmatpush.bf16.msra.mxu0 0
        %996 = vmatpush.bf16.msra.mxu0 0
        %997 = vmatpush.bf16.msra.mxu0 0
        %998 = vmatpush.bf16.msra.mxu0 0
        %999 = vmatpush.bf16.msra.mxu0 %v990
        %1000 = vmatpush.bf16.msra.mxu0 %v989
        %1001 = vmatmul.bf16.gmra.mxu0 %v555
        %v1002 = vpop.f32.mrf.mxu0
        %v1003 = vadd.f32 0.0, %v1002
        %v1004 = vpop.f32.mrf.mxu0
        %1005 = vdwg.mxu0
        %1006 = vmatpush.bf16.msra.mxu0 0
        %1007 = vmatpush.bf16.msra.mxu0 0
        %1008 = vmatpush.bf16.msra.mxu0 0
        %1009 = vmatpush.bf16.msra.mxu0 0
        %1010 = vmatpush.bf16.msra.mxu0 0
        %1011 = vmatpush.bf16.msra.mxu0 0
        %1012 = vmatpush.bf16.msra.mxu0 %v990
        %1013 = vmatpush.bf16.msra.mxu0 %v989
        %1014 = vmatmul.bf16.gmra.mxu0 %v571
        %v1015 = vpop.f32.mrf.mxu0
        %v1016 = vadd.f32 0.0, %v1015
        %v1017 = vpop.f32.mrf.mxu0
        %1018 = vdwg.mxu0
        %1019 = vmatpush.bf16.msra.mxu0 0
        %1020 = vmatpush.bf16.msra.mxu0 0
        %1021 = vmatpush.bf16.msra.mxu0 0
        %1022 = vmatpush.bf16.msra.mxu0 0
        %1023 = vmatpush.bf16.msra.mxu0 0
        %1024 = vmatpush.bf16.msra.mxu0 0
        %1025 = vmatpush.bf16.msra.mxu0 %v990
        %1026 = vmatpush.bf16.msra.mxu0 %v989
        %1027 = vmatmul.bf16.gmra.mxu0 %v587
        %v1028 = vpop.f32.mrf.mxu0
        %v1029 = vadd.f32 0.0, %v1028
        %v1030 = vpop.f32.mrf.mxu0
        %1031 = vdwg.mxu0
        %1032 = vmatpush.bf16.msra.mxu0 0
        %1033 = vmatpush.bf16.msra.mxu0 0
        %1034 = vmatpush.bf16.msra.mxu0 0
        %1035 = vmatpush.bf16.msra.mxu0 0
        %1036 = vmatpush.bf16.msra.mxu0 0
        %1037 = vmatpush.bf16.msra.mxu0 0
        %1038 = vmatpush.bf16.msra.mxu0 %v990
        %1039 = vmatpush.bf16.msra.mxu0 %v989
        %1040 = vmatmul.bf16.gmra.mxu0 %v603
        %v1041 = vpop.f32.mrf.mxu0
        %v1042 = vadd.f32 0.0, %v1041
        %v1043 = vpop.f32.mrf.mxu0
        %1044 = vdwg.mxu0
        %v1045 = vpack.c.bf16 %v875, %v875
        %v1046 = vpack.c.bf16 %v888, %v888
        %v1047 = vpack.c.bf16 %v901, %v901
        %v1048 = vpack.c.bf16 %v914, %v914
        %v1049 = vpack.c.bf16 %v939, %v939
        %v1050 = vpack.c.bf16 %v952, %v952
        %v1051 = vpack.c.bf16 %v965, %v965
        %v1052 = vpack.c.bf16 %v978, %v978
        %v1054 = vsel %vm626, %v1045, 0
        %v1057 = vsel %vm626, %v1049, 0
        %1059 = vmatpush.bf16.xpose.msra.mxu0 0
        %1060 = vmatpush.bf16.xpose.msra.mxu0 0
        %1061 = vmatpush.bf16.xpose.msra.mxu0 0
        %1062 = vmatpush.bf16.xpose.msra.mxu0 0
        %1063 = vmatpush.bf16.xpose.msra.mxu0 0
        %1064 = vmatpush.bf16.xpose.msra.mxu0 0
        %1065 = vmatpush.bf16.xpose.msra.mxu0 0
        %1066 = vmatpush.bf16.xpose.msra.mxu0 %v1057
        %1067 = vmatmul.bf16.gmra.mxu0 %v1054
        %v1068 = vpop.f32.mrf.mxu0
        %v1069 = vadd.f32 0.0, %v1068
        %v1070 = vpop.f32.mrf.mxu0
        %1071 = vdwg.mxu0
        %v1073 = vsel %vm626, %v1046, 0
        %v1076 = vsel %vm626, %v1050, 0
        %1078 = vmatpush.bf16.xpose.msra.mxu0 0
        %1079 = vmatpush.bf16.xpose.msra.mxu0 0
        %1080 = vmatpush.bf16.xpose.msra.mxu0 0
        %1081 = vmatpush.bf16.xpose.msra.mxu0 0
        %1082 = vmatpush.bf16.xpose.msra.mxu0 0
        %1083 = vmatpush.bf16.xpose.msra.mxu0 0
        %1084 = vmatpush.bf16.xpose.msra.mxu0 0
        %1085 = vmatpush.bf16.xpose.msra.mxu0 %v1076
        %1086 = vmatmul.bf16.gmra.mxu0 %v1073
        %v1087 = vpop.f32.mrf.mxu0
        %v1088 = vadd.f32 0.0, %v1087
        %v1089 = vpop.f32.mrf.mxu0
        %1090 = vdwg.mxu0
        %v1092 = vsel %vm626, %v1047, 0
        %v1095 = vsel %vm626, %v1051, 0
        %1097 = vmatpush.bf16.xpose.msra.mxu0 0
        %1098 = vmatpush.bf16.xpose.msra.mxu0 0
        %1099 = vmatpush.bf16.xpose.msra.mxu0 0
        %1100 = vmatpush.bf16.xpose.msra.mxu0 0
        %1101 = vmatpush.bf16.xpose.msra.mxu0 0
        %1102 = vmatpush.bf16.xpose.msra.mxu0 0
        %1103 = vmatpush.bf16.xpose.msra.mxu0 0
        %1104 = vmatpush.bf16.xpose.msra.mxu0 %v1095
        %1105 = vmatmul.bf16.gmra.mxu0 %v1092
        %v1106 = vpop.f32.mrf.mxu0
        %v1107 = vadd.f32 0.0, %v1106
        %v1108 = vpop.f32.mrf.mxu0
        %1109 = vdwg.mxu0
        %v1111 = vsel %vm626, %v1048, 0
        %v1114 = vsel %vm626, %v1052, 0
        %1116 = vmatpush.bf16.xpose.msra.mxu0 0
        %1117 = vmatpush.bf16.xpose.msra.mxu0 0
        %1118 = vmatpush.bf16.xpose.msra.mxu0 0
        %1119 = vmatpush.bf16.xpose.msra.mxu0 0
        %1120 = vmatpush.bf16.xpose.msra.mxu0 0
        %1121 = vmatpush.bf16.xpose.msra.mxu0 0
        %1122 = vmatpush.bf16.xpose.msra.mxu0 0
        %1123 = vmatpush.bf16.xpose.msra.mxu0 %v1114
        %1124 = vmatmul.bf16.gmra.mxu0 %v1111
        %v1125 = vpop.f32.mrf.mxu0
        %v1126 = vadd.f32 0.0, %v1125
        %v1127 = vpop.f32.mrf.mxu0
        %1128 = vdwg.mxu0
        %v1129 = vsel %vm626, %v1069, -inf
        %1130 = vmax.xlane.f32.xlu0 %v1129
        %v1131 = vpop.xlane.xlu0 %1130
        %v1132 = vsel %vm626, %v1088, -inf
        %1133 = vmax.xlane.f32.xlu0 %v1132
        %v1134 = vpop.xlane.xlu0 %1133
        %v1135 = vsel %vm626, %v1107, -inf
        %1136 = vmax.xlane.f32.xlu0 %v1135
        %v1137 = vpop.xlane.xlu0 %1136
        %v1138 = vsel %vm626, %v1126, -inf
        %1139 = vmax.xlane.f32.xlu0 %v1138
        %v1140 = vpop.xlane.xlu0 %1139
        %v1141 = vsub.f32 %v1069, %v1131
        %v1142 = vsub.f32 %v1088, %v1134
        %v1143 = vsub.f32 %v1107, %v1137
        %v1144 = vsub.f32 %v1126, %v1140
        %v1145 = vmul.f32 %v1141, 1.442695
        %v1146 = vpow.pop %v1145
        %v1147 = vmul.f32 %v1142, 1.442695
        %v1148 = vpow.pop %v1147
        %v1149 = vmul.f32 %v1143, 1.442695
        %v1150 = vpow.pop %v1149
        %v1151 = vmul.f32 %v1144, 1.442695
        %v1152 = vpow.pop %v1151
        %v1153 = vsel %vm626, %v1146, 0.0
        %1154 = vadd.xlane.f32.xlu0 %v1153
        %v1155 = vpop.xlane.xlu0 %1154
        %v1156 = vsel %vm626, %v1148, 0.0
        %1157 = vadd.xlane.f32.xlu0 %v1156
        %v1158 = vpop.xlane.xlu0 %1157
        %v1159 = vsel %vm626, %v1150, 0.0
        %1160 = vadd.xlane.f32.xlu0 %v1159
        %v1161 = vpop.xlane.xlu0 %1160
        %v1162 = vsel %vm626, %v1152, 0.0
        %1163 = vadd.xlane.f32.xlu0 %v1162
        %v1164 = vpop.xlane.xlu0 %1163
        %v1165 = vrcp.pop %v1155
        %v1166 = vrcp.pop %v1158
        %v1167 = vrcp.pop %v1161
        %v1168 = vrcp.pop %v1164
        %v1169 = vmul.f32 %v1146, %v1165
        %v1170 = vmul.f32 %v1148, %v1166
        %v1171 = vmul.f32 %v1150, %v1167
        %v1172 = vmul.f32 %v1152, %v1168
        %v1173 = vpack.c.bf16 %v1169, %v1169
        %v1174 = vpack.c.bf16 %v1170, %v1170
        %v1175 = vpack.c.bf16 %v1171, %v1171
        %v1176 = vpack.c.bf16 %v1172, %v1172
        %v1177 = vpack.c.bf16 %v1003, %v1003
        %v1178 = vpack.c.bf16 %v1016, %v1016
        %v1179 = vpack.c.bf16 %v1029, %v1029
        %v1180 = vpack.c.bf16 %v1042, %v1042
        %v1182 = vsel %vm626, %v1173, 0
        %v1185 = vsel %vm758, %v1177, 0
        %1187 = vmatpush.bf16.msra.mxu0 0
        %1188 = vmatpush.bf16.msra.mxu0 0
        %1189 = vmatpush.bf16.msra.mxu0 0
        %1190 = vmatpush.bf16.msra.mxu0 0
        %1191 = vmatpush.bf16.msra.mxu0 0
        %1192 = vmatpush.bf16.msra.mxu0 0
        %1193 = vmatpush.bf16.msra.mxu0 0
        %1194 = vmatpush.bf16.msra.mxu0 %v1185
        %1195 = vmatmul.bf16.gmra.mxu0 %v1182
        %v1196 = vpop.f32.mrf.mxu0
        %v1197 = vadd.f32 0.0, %v1196
        %v1198 = vpop.f32.mrf.mxu0
        %1199 = vdwg.mxu0
        %v1201 = vsel %vm626, %v1174, 0
        %v1204 = vsel %vm758, %v1178, 0
        %1206 = vmatpush.bf16.msra.mxu0 0
        %1207 = vmatpush.bf16.msra.mxu0 0
        %1208 = vmatpush.bf16.msra.mxu0 0
        %1209 = vmatpush.bf16.msra.mxu0 0
        %1210 = vmatpush.bf16.msra.mxu0 0
        %1211 = vmatpush.bf16.msra.mxu0 0
        %1212 = vmatpush.bf16.msra.mxu0 0
        %1213 = vmatpush.bf16.msra.mxu0 %v1204
        %1214 = vmatmul.bf16.gmra.mxu0 %v1201
        %v1215 = vpop.f32.mrf.mxu0
        %v1216 = vadd.f32 0.0, %v1215
        %v1217 = vpop.f32.mrf.mxu0
        %1218 = vdwg.mxu0
        %v1220 = vsel %vm626, %v1175, 0
        %v1223 = vsel %vm758, %v1179, 0
        %1225 = vmatpush.bf16.msra.mxu0 0
        %1226 = vmatpush.bf16.msra.mxu0 0
        %1227 = vmatpush.bf16.msra.mxu0 0
        %1228 = vmatpush.bf16.msra.mxu0 0
        %1229 = vmatpush.bf16.msra.mxu0 0
        %1230 = vmatpush.bf16.msra.mxu0 0
        %1231 = vmatpush.bf16.msra.mxu0 0
        %1232 = vmatpush.bf16.msra.mxu0 %v1223
        %1233 = vmatmul.bf16.gmra.mxu0 %v1220
        %v1234 = vpop.f32.mrf.mxu0
        %v1235 = vadd.f32 0.0, %v1234
        %v1236 = vpop.f32.mrf.mxu0
        %1237 = vdwg.mxu0
        %v1239 = vsel %vm626, %v1176, 0
        %v1242 = vsel %vm758, %v1180, 0
        %1244 = vmatpush.bf16.msra.mxu0 0
        %1245 = vmatpush.bf16.msra.mxu0 0
        %1246 = vmatpush.bf16.msra.mxu0 0
        %1247 = vmatpush.bf16.msra.mxu0 0
        %1248 = vmatpush.bf16.msra.mxu0 0
        %1249 = vmatpush.bf16.msra.mxu0 0
        %1250 = vmatpush.bf16.msra.mxu0 0
        %1251 = vmatpush.bf16.msra.mxu0 %v1242
        %1252 = vmatmul.bf16.gmra.mxu0 %v1239
        %v1253 = vpop.f32.mrf.mxu0
        %v1254 = vadd.f32 0.0, %v1253
        %v1255 = vpop.f32.mrf.mxu0
        %1256 = vdwg.mxu0
        %v1257 = vpack.c.bf16 %v1197, %v1197
        %v1258 = vpack.c.bf16 %v1216, %v1216
        %v1259 = vpack.c.bf16 %v1235, %v1235
        %v1260 = vpack.c.bf16 %v1254, %v1254
        %v1262 = vsel %vm626, %v1257, 0
        %v1265 = vsel %vm758, %v852, 0
        %1267 = vmatpush.bf16.msra.mxu0 0
        %1268 = vmatpush.bf16.msra.mxu0 0
        %1269 = vmatpush.bf16.msra.mxu0 0
        %1270 = vmatpush.bf16.msra.mxu0 0
        %1271 = vmatpush.bf16.msra.mxu0 0
        %1272 = vmatpush.bf16.msra.mxu0 0
        %1273 = vmatpush.bf16.msra.mxu0 0
        %1274 = vmatpush.bf16.msra.mxu0 %v1265
        %1275 = vmatmul.bf16.gmra.mxu0 %v1262
        %v1276 = vpop.f32.mrf.mxu0
        %v1277 = vadd.f32 0.0, %v1276
        %v1278 = vpop.f32.mrf.mxu0
        %1279 = vdwg.mxu0
        %v1281 = vsel %vm626, %v1258, 0
        %1283 = vmatpush.bf16.msra.mxu0 0
        %1284 = vmatpush.bf16.msra.mxu0 0
        %1285 = vmatpush.bf16.msra.mxu0 0
        %1286 = vmatpush.bf16.msra.mxu0 0
        %1287 = vmatpush.bf16.msra.mxu0 0
        %1288 = vmatpush.bf16.msra.mxu0 0
        %1289 = vmatpush.bf16.msra.mxu0 0
        %1290 = vmatpush.bf16.msra.mxu0 %v1265
        %1291 = vmatmul.bf16.gmra.mxu0 %v1281
        %v1292 = vpop.f32.mrf.mxu0
        %v1293 = vadd.f32 0.0, %v1292
        %v1294 = vpop.f32.mrf.mxu0
        %1295 = vdwg.mxu0
        %v1297 = vsel %vm626, %v1259, 0
        %1299 = vmatpush.bf16.msra.mxu0 0
        %1300 = vmatpush.bf16.msra.mxu0 0
        %1301 = vmatpush.bf16.msra.mxu0 0
        %1302 = vmatpush.bf16.msra.mxu0 0
        %1303 = vmatpush.bf16.msra.mxu0 0
        %1304 = vmatpush.bf16.msra.mxu0 0
        %1305 = vmatpush.bf16.msra.mxu0 0
        %1306 = vmatpush.bf16.msra.mxu0 %v1265
        %1307 = vmatmul.bf16.gmra.mxu0 %v1297
        %v1308 = vpop.f32.mrf.mxu0
        %v1309 = vadd.f32 0.0, %v1308
        %v1310 = vpop.f32.mrf.mxu0
        %1311 = vdwg.mxu0
        %v1313 = vsel %vm626, %v1260, 0
        %1315 = vmatpush.bf16.msra.mxu0 0
        %1316 = vmatpush.bf16.msra.mxu0 0
        %1317 = vmatpush.bf16.msra.mxu0 0
        %1318 = vmatpush.bf16.msra.mxu0 0
        %1319 = vmatpush.bf16.msra.mxu0 0
        %1320 = vmatpush.bf16.msra.mxu0 0
        %1321 = vmatpush.bf16.msra.mxu0 0
        %1322 = vmatpush.bf16.msra.mxu0 %v1265
        %1323 = vmatmul.bf16.gmra.mxu0 %v1313
        %v1324 = vpop.f32.mrf.mxu0
        %v1325 = vadd.f32 0.0, %v1324
        %v1326 = vpop.f32.mrf.mxu0
        %1327 = vdwg.mxu0
        %v1329 = vsel %vm626, %v832, 0
        %v1332 = vsel %vm758, %v388, 0
        %1334 = vmatpush.bf16.msra.mxu0 0
        %1335 = vmatpush.bf16.msra.mxu0 0
        %1336 = vmatpush.bf16.msra.mxu0 0
        %1337 = vmatpush.bf16.msra.mxu0 0
        %1338 = vmatpush.bf16.msra.mxu0 0
        %1339 = vmatpush.bf16.msra.mxu0 0
        %1340 = vmatpush.bf16.msra.mxu0 0
        %1341 = vmatpush.bf16.msra.mxu0 %v1332
        %1342 = vmatmul.bf16.gmra.mxu0 %v1329
        %v1343 = vpop.f32.mrf.mxu0
        %v1344 = vadd.f32 %v1277, %v1343
        %v1345 = vpop.f32.mrf.mxu0
        %1346 = vdwg.mxu0
        %v1348 = vsel %vm626, %v833, 0
        %1350 = vmatpush.bf16.msra.mxu0 0
        %1351 = vmatpush.bf16.msra.mxu0 0
        %1352 = vmatpush.bf16.msra.mxu0 0
        %1353 = vmatpush.bf16.msra.mxu0 0
        %1354 = vmatpush.bf16.msra.mxu0 0
        %1355 = vmatpush.bf16.msra.mxu0 0
        %1356 = vmatpush.bf16.msra.mxu0 0
        %1357 = vmatpush.bf16.msra.mxu0 %v1332
        %1358 = vmatmul.bf16.gmra.mxu0 %v1348
        %v1359 = vpop.f32.mrf.mxu0
        %v1360 = vadd.f32 %v1293, %v1359
        %v1361 = vpop.f32.mrf.mxu0
        %1362 = vdwg.mxu0
        %v1364 = vsel %vm626, %v834, 0
        %1366 = vmatpush.bf16.msra.mxu0 0
        %1367 = vmatpush.bf16.msra.mxu0 0
        %1368 = vmatpush.bf16.msra.mxu0 0
        %1369 = vmatpush.bf16.msra.mxu0 0
        %1370 = vmatpush.bf16.msra.mxu0 0
        %1371 = vmatpush.bf16.msra.mxu0 0
        %1372 = vmatpush.bf16.msra.mxu0 0
        %1373 = vmatpush.bf16.msra.mxu0 %v1332
        %1374 = vmatmul.bf16.gmra.mxu0 %v1364
        %v1375 = vpop.f32.mrf.mxu0
        %v1376 = vadd.f32 %v1309, %v1375
        %v1377 = vpop.f32.mrf.mxu0
        %1378 = vdwg.mxu0
        %v1380 = vsel %vm626, %v835, 0
        %1382 = vmatpush.bf16.msra.mxu0 0
        %1383 = vmatpush.bf16.msra.mxu0 0
        %1384 = vmatpush.bf16.msra.mxu0 0
        %1385 = vmatpush.bf16.msra.mxu0 0
        %1386 = vmatpush.bf16.msra.mxu0 0
        %1387 = vmatpush.bf16.msra.mxu0 0
        %1388 = vmatpush.bf16.msra.mxu0 0
        %1389 = vmatpush.bf16.msra.mxu0 %v1332
        %1390 = vmatmul.bf16.gmra.mxu0 %v1380
        %v1391 = vpop.f32.mrf.mxu0
        %v1392 = vadd.f32 %v1325, %v1391
        %v1393 = vpop.f32.mrf.mxu0
        %1394 = vdwg.mxu0
        %s1395 = scalar_lea.vmem %s3, 32
        %v1396 = vld [vmem:[%s1395] sm:$0xf]
        %v1397 = vld [vmem:[%s1395 + $0x4] sm:$0xf]
        %v1398 = vld [vmem:[%s1395 + $0x8] sm:$0xf]
        %v1399 = vld [vmem:[%s1395 + $0xc] sm:$0xf]
        %s1400 = scalar_lea.vmem %s4, 32
        %v1401 = vld [vmem:[%s1400] sm:$0xf]
        %v1402 = vld [vmem:[%s1400 + $0x4] sm:$0xf]
        %v1403 = vld [vmem:[%s1400 + $0x8] sm:$0xf]
        %v1404 = vld [vmem:[%s1400 + $0xc] sm:$0xf]
        %s1405 = scalar_lea.vmem %s5, 32
        %v1406 = vld [vmem:[%s1405] sm:$0xf]
        %v1407 = vld [vmem:[%s1405 + $0x4] sm:$0xf]
        %v1408 = vld [vmem:[%s1405 + $0x8] sm:$0xf]
        %v1409 = vld [vmem:[%s1405 + $0xc] sm:$0xf]
        %s1410 = scalar_lea.vmem %s6, 8
        %v1411 = vld [vmem:[%s1410] sm:$0xf]
        %v1416 = vunpack.c.l.b16 %v1396
        %v1417 = vunpack.c.l.b16 %v1397
        %v1418 = vunpack.c.l.b16 %v1398
        %v1419 = vunpack.c.l.b16 %v1399
        %v1420 = vpack.c.b16 %v1417, %v1416
        %v1421 = vpack.c.b16 %v1419, %v1418
        %1424 = vmatpush.bf16.msra.mxu0 0
        %1425 = vmatpush.bf16.msra.mxu0 0
        %1426 = vmatpush.bf16.msra.mxu0 0
        %1427 = vmatpush.bf16.msra.mxu0 0
        %1428 = vmatpush.bf16.msra.mxu0 0
        %1429 = vmatpush.bf16.msra.mxu0 0
        %1430 = vmatpush.bf16.msra.mxu0 %v1421
        %1431 = vmatpush.bf16.msra.mxu0 %v1420
        %1432 = vmatmul.bf16.gmra.mxu0 %v403
        %v1433 = vpop.f32.mrf.mxu0
        %v1434 = vadd.f32 0.0, %v1433
        %v1435 = vpop.f32.mrf.mxu0
        %1436 = vdwg.mxu0
        %1437 = vmatpush.bf16.msra.mxu0 0
        %1438 = vmatpush.bf16.msra.mxu0 0
        %1439 = vmatpush.bf16.msra.mxu0 0
        %1440 = vmatpush.bf16.msra.mxu0 0
        %1441 = vmatpush.bf16.msra.mxu0 0
        %1442 = vmatpush.bf16.msra.mxu0 0
        %1443 = vmatpush.bf16.msra.mxu0 %v1421
        %1444 = vmatpush.bf16.msra.mxu0 %v1420
        %1445 = vmatmul.bf16.gmra.mxu0 %v419
        %v1446 = vpop.f32.mrf.mxu0
        %v1447 = vadd.f32 0.0, %v1446
        %v1448 = vpop.f32.mrf.mxu0
        %1449 = vdwg.mxu0
        %1450 = vmatpush.bf16.msra.mxu0 0
        %1451 = vmatpush.bf16.msra.mxu0 0
        %1452 = vmatpush.bf16.msra.mxu0 0
        %1453 = vmatpush.bf16.msra.mxu0 0
        %1454 = vmatpush.bf16.msra.mxu0 0
        %1455 = vmatpush.bf16.msra.mxu0 0
        %1456 = vmatpush.bf16.msra.mxu0 %v1421
        %1457 = vmatpush.bf16.msra.mxu0 %v1420
        %1458 = vmatmul.bf16.gmra.mxu0 %v435
        %v1459 = vpop.f32.mrf.mxu0
        %v1460 = vadd.f32 0.0, %v1459
        %v1461 = vpop.f32.mrf.mxu0
        %1462 = vdwg.mxu0
        %1463 = vmatpush.bf16.msra.mxu0 0
        %1464 = vmatpush.bf16.msra.mxu0 0
        %1465 = vmatpush.bf16.msra.mxu0 0
        %1466 = vmatpush.bf16.msra.mxu0 0
        %1467 = vmatpush.bf16.msra.mxu0 0
        %1468 = vmatpush.bf16.msra.mxu0 0
        %1469 = vmatpush.bf16.msra.mxu0 %v1421
        %1470 = vmatpush.bf16.msra.mxu0 %v1420
        %1471 = vmatmul.bf16.gmra.mxu0 %v451
        %v1472 = vpop.f32.mrf.mxu0
        %v1473 = vadd.f32 0.0, %v1472
        %v1474 = vpop.f32.mrf.mxu0
        %1475 = vdwg.mxu0
        %v1480 = vunpack.c.l.b16 %v1401
        %v1481 = vunpack.c.l.b16 %v1402
        %v1482 = vunpack.c.l.b16 %v1403
        %v1483 = vunpack.c.l.b16 %v1404
        %v1484 = vpack.c.b16 %v1481, %v1480
        %v1485 = vpack.c.b16 %v1483, %v1482
        %1488 = vmatpush.bf16.msra.mxu0 0
        %1489 = vmatpush.bf16.msra.mxu0 0
        %1490 = vmatpush.bf16.msra.mxu0 0
        %1491 = vmatpush.bf16.msra.mxu0 0
        %1492 = vmatpush.bf16.msra.mxu0 0
        %1493 = vmatpush.bf16.msra.mxu0 0
        %1494 = vmatpush.bf16.msra.mxu0 %v1485
        %1495 = vmatpush.bf16.msra.mxu0 %v1484
        %1496 = vmatmul.bf16.gmra.mxu0 %v479
        %v1497 = vpop.f32.mrf.mxu0
        %v1498 = vadd.f32 0.0, %v1497
        %v1499 = vpop.f32.mrf.mxu0
        %1500 = vdwg.mxu0
        %1501 = vmatpush.bf16.msra.mxu0 0
        %1502 = vmatpush.bf16.msra.mxu0 0
        %1503 = vmatpush.bf16.msra.mxu0 0
        %1504 = vmatpush.bf16.msra.mxu0 0
        %1505 = vmatpush.bf16.msra.mxu0 0
        %1506 = vmatpush.bf16.msra.mxu0 0
        %1507 = vmatpush.bf16.msra.mxu0 %v1485
        %1508 = vmatpush.bf16.msra.mxu0 %v1484
        %1509 = vmatmul.bf16.gmra.mxu0 %v495
        %v1510 = vpop.f32.mrf.mxu0
        %v1511 = vadd.f32 0.0, %v1510
        %v1512 = vpop.f32.mrf.mxu0
        %1513 = vdwg.mxu0
        %1514 = vmatpush.bf16.msra.mxu0 0
        %1515 = vmatpush.bf16.msra.mxu0 0
        %1516 = vmatpush.bf16.msra.mxu0 0
        %1517 = vmatpush.bf16.msra.mxu0 0
        %1518 = vmatpush.bf16.msra.mxu0 0
        %1519 = vmatpush.bf16.msra.mxu0 0
        %1520 = vmatpush.bf16.msra.mxu0 %v1485
        %1521 = vmatpush.bf16.msra.mxu0 %v1484
        %1522 = vmatmul.bf16.gmra.mxu0 %v511
        %v1523 = vpop.f32.mrf.mxu0
        %v1524 = vadd.f32 0.0, %v1523
        %v1525 = vpop.f32.mrf.mxu0
        %1526 = vdwg.mxu0
        %1527 = vmatpush.bf16.msra.mxu0 0
        %1528 = vmatpush.bf16.msra.mxu0 0
        %1529 = vmatpush.bf16.msra.mxu0 0
        %1530 = vmatpush.bf16.msra.mxu0 0
        %1531 = vmatpush.bf16.msra.mxu0 0
        %1532 = vmatpush.bf16.msra.mxu0 0
        %1533 = vmatpush.bf16.msra.mxu0 %v1485
        %1534 = vmatpush.bf16.msra.mxu0 %v1484
        %1535 = vmatmul.bf16.gmra.mxu0 %v527
        %v1536 = vpop.f32.mrf.mxu0
        %v1537 = vadd.f32 0.0, %v1536
        %v1538 = vpop.f32.mrf.mxu0
        %1539 = vdwg.mxu0
        %v1544 = vunpack.c.l.b16 %v1406
        %v1545 = vunpack.c.l.b16 %v1407
        %v1546 = vunpack.c.l.b16 %v1408
        %v1547 = vunpack.c.l.b16 %v1409
        %v1548 = vpack.c.b16 %v1545, %v1544
        %v1549 = vpack.c.b16 %v1547, %v1546
        %1552 = vmatpush.bf16.msra.mxu0 0
        %1553 = vmatpush.bf16.msra.mxu0 0
        %1554 = vmatpush.bf16.msra.mxu0 0
        %1555 = vmatpush.bf16.msra.mxu0 0
        %1556 = vmatpush.bf16.msra.mxu0 0
        %1557 = vmatpush.bf16.msra.mxu0 0
        %1558 = vmatpush.bf16.msra.mxu0 %v1549
        %1559 = vmatpush.bf16.msra.mxu0 %v1548
        %1560 = vmatmul.bf16.gmra.mxu0 %v555
        %v1561 = vpop.f32.mrf.mxu0
        %v1562 = vadd.f32 0.0, %v1561
        %v1563 = vpop.f32.mrf.mxu0
        %1564 = vdwg.mxu0
        %1565 = vmatpush.bf16.msra.mxu0 0
        %1566 = vmatpush.bf16.msra.mxu0 0
        %1567 = vmatpush.bf16.msra.mxu0 0
        %1568 = vmatpush.bf16.msra.mxu0 0
        %1569 = vmatpush.bf16.msra.mxu0 0
        %1570 = vmatpush.bf16.msra.mxu0 0
        %1571 = vmatpush.bf16.msra.mxu0 %v1549
        %1572 = vmatpush.bf16.msra.mxu0 %v1548
        %1573 = vmatmul.bf16.gmra.mxu0 %v571
        %v1574 = vpop.f32.mrf.mxu0
        %v1575 = vadd.f32 0.0, %v1574
        %v1576 = vpop.f32.mrf.mxu0
        %1577 = vdwg.mxu0
        %1578 = vmatpush.bf16.msra.mxu0 0
        %1579 = vmatpush.bf16.msra.mxu0 0
        %1580 = vmatpush.bf16.msra.mxu0 0
        %1581 = vmatpush.bf16.msra.mxu0 0
        %1582 = vmatpush.bf16.msra.mxu0 0
        %1583 = vmatpush.bf16.msra.mxu0 0
        %1584 = vmatpush.bf16.msra.mxu0 %v1549
        %1585 = vmatpush.bf16.msra.mxu0 %v1548
        %1586 = vmatmul.bf16.gmra.mxu0 %v587
        %v1587 = vpop.f32.mrf.mxu0
        %v1588 = vadd.f32 0.0, %v1587
        %v1589 = vpop.f32.mrf.mxu0
        %1590 = vdwg.mxu0
        %1591 = vmatpush.bf16.msra.mxu0 0
        %1592 = vmatpush.bf16.msra.mxu0 0
        %1593 = vmatpush.bf16.msra.mxu0 0
        %1594 = vmatpush.bf16.msra.mxu0 0
        %1595 = vmatpush.bf16.msra.mxu0 0
        %1596 = vmatpush.bf16.msra.mxu0 0
        %1597 = vmatpush.bf16.msra.mxu0 %v1549
        %1598 = vmatpush.bf16.msra.mxu0 %v1548
        %1599 = vmatmul.bf16.gmra.mxu0 %v603
        %v1600 = vpop.f32.mrf.mxu0
        %v1601 = vadd.f32 0.0, %v1600
        %v1602 = vpop.f32.mrf.mxu0
        %1603 = vdwg.mxu0
        %v1604 = vpack.c.bf16 %v1434, %v1434
        %v1605 = vpack.c.bf16 %v1447, %v1447
        %v1606 = vpack.c.bf16 %v1460, %v1460
        %v1607 = vpack.c.bf16 %v1473, %v1473
        %v1608 = vpack.c.bf16 %v1498, %v1498
        %v1609 = vpack.c.bf16 %v1511, %v1511
        %v1610 = vpack.c.bf16 %v1524, %v1524
        %v1611 = vpack.c.bf16 %v1537, %v1537
        %v1613 = vsel %vm626, %v1604, 0
        %v1616 = vsel %vm626, %v1608, 0
        %1618 = vmatpush.bf16.xpose.msra.mxu0 0
        %1619 = vmatpush.bf16.xpose.msra.mxu0 0
        %1620 = vmatpush.bf16.xpose.msra.mxu0 0
        %1621 = vmatpush.bf16.xpose.msra.mxu0 0
        %1622 = vmatpush.bf16.xpose.msra.mxu0 0
        %1623 = vmatpush.bf16.xpose.msra.mxu0 0
        %1624 = vmatpush.bf16.xpose.msra.mxu0 0
        %1625 = vmatpush.bf16.xpose.msra.mxu0 %v1616
        %1626 = vmatmul.bf16.gmra.mxu0 %v1613
        %v1627 = vpop.f32.mrf.mxu0
        %v1628 = vadd.f32 0.0, %v1627
        %v1629 = vpop.f32.mrf.mxu0
        %1630 = vdwg.mxu0
        %v1632 = vsel %vm626, %v1605, 0
        %v1635 = vsel %vm626, %v1609, 0
        %1637 = vmatpush.bf16.xpose.msra.mxu0 0
        %1638 = vmatpush.bf16.xpose.msra.mxu0 0
        %1639 = vmatpush.bf16.xpose.msra.mxu0 0
        %1640 = vmatpush.bf16.xpose.msra.mxu0 0
        %1641 = vmatpush.bf16.xpose.msra.mxu0 0
        %1642 = vmatpush.bf16.xpose.msra.mxu0 0
        %1643 = vmatpush.bf16.xpose.msra.mxu0 0
        %1644 = vmatpush.bf16.xpose.msra.mxu0 %v1635
        %1645 = vmatmul.bf16.gmra.mxu0 %v1632
        %v1646 = vpop.f32.mrf.mxu0
        %v1647 = vadd.f32 0.0, %v1646
        %v1648 = vpop.f32.mrf.mxu0
        %1649 = vdwg.mxu0
        %v1651 = vsel %vm626, %v1606, 0
        %v1654 = vsel %vm626, %v1610, 0
        %1656 = vmatpush.bf16.xpose.msra.mxu0 0
        %1657 = vmatpush.bf16.xpose.msra.mxu0 0
        %1658 = vmatpush.bf16.xpose.msra.mxu0 0
        %1659 = vmatpush.bf16.xpose.msra.mxu0 0
        %1660 = vmatpush.bf16.xpose.msra.mxu0 0
        %1661 = vmatpush.bf16.xpose.msra.mxu0 0
        %1662 = vmatpush.bf16.xpose.msra.mxu0 0
        %1663 = vmatpush.bf16.xpose.msra.mxu0 %v1654
        %1664 = vmatmul.bf16.gmra.mxu0 %v1651
        %v1665 = vpop.f32.mrf.mxu0
        %v1666 = vadd.f32 0.0, %v1665
        %v1667 = vpop.f32.mrf.mxu0
        %1668 = vdwg.mxu0
        %v1670 = vsel %vm626, %v1607, 0
        %v1673 = vsel %vm626, %v1611, 0
        %1675 = vmatpush.bf16.xpose.msra.mxu0 0
        %1676 = vmatpush.bf16.xpose.msra.mxu0 0
        %1677 = vmatpush.bf16.xpose.msra.mxu0 0
        %1678 = vmatpush.bf16.xpose.msra.mxu0 0
        %1679 = vmatpush.bf16.xpose.msra.mxu0 0
        %1680 = vmatpush.bf16.xpose.msra.mxu0 0
        %1681 = vmatpush.bf16.xpose.msra.mxu0 0
        %1682 = vmatpush.bf16.xpose.msra.mxu0 %v1673
        %1683 = vmatmul.bf16.gmra.mxu0 %v1670
        %v1684 = vpop.f32.mrf.mxu0
        %v1685 = vadd.f32 0.0, %v1684
        %v1686 = vpop.f32.mrf.mxu0
        %1687 = vdwg.mxu0
        %v1688 = vsel %vm626, %v1628, -inf
        %1689 = vmax.xlane.f32.xlu0 %v1688
        %v1690 = vpop.xlane.xlu0 %1689
        %v1691 = vsel %vm626, %v1647, -inf
        %1692 = vmax.xlane.f32.xlu0 %v1691
        %v1693 = vpop.xlane.xlu0 %1692
        %v1694 = vsel %vm626, %v1666, -inf
        %1695 = vmax.xlane.f32.xlu0 %v1694
        %v1696 = vpop.xlane.xlu0 %1695
        %v1697 = vsel %vm626, %v1685, -inf
        %1698 = vmax.xlane.f32.xlu0 %v1697
        %v1699 = vpop.xlane.xlu0 %1698
        %v1700 = vsub.f32 %v1628, %v1690
        %v1701 = vsub.f32 %v1647, %v1693
        %v1702 = vsub.f32 %v1666, %v1696
        %v1703 = vsub.f32 %v1685, %v1699
        %v1704 = vmul.f32 %v1700, 1.442695
        %v1705 = vpow.pop %v1704
        %v1706 = vmul.f32 %v1701, 1.442695
        %v1707 = vpow.pop %v1706
        %v1708 = vmul.f32 %v1702, 1.442695
        %v1709 = vpow.pop %v1708
        %v1710 = vmul.f32 %v1703, 1.442695
        %v1711 = vpow.pop %v1710
        %v1712 = vsel %vm626, %v1705, 0.0
        %1713 = vadd.xlane.f32.xlu0 %v1712
        %v1714 = vpop.xlane.xlu0 %1713
        %v1715 = vsel %vm626, %v1707, 0.0
        %1716 = vadd.xlane.f32.xlu0 %v1715
        %v1717 = vpop.xlane.xlu0 %1716
        %v1718 = vsel %vm626, %v1709, 0.0
        %1719 = vadd.xlane.f32.xlu0 %v1718
        %v1720 = vpop.xlane.xlu0 %1719
        %v1721 = vsel %vm626, %v1711, 0.0
        %1722 = vadd.xlane.f32.xlu0 %v1721
        %v1723 = vpop.xlane.xlu0 %1722
        %v1724 = vrcp.pop %v1714
        %v1725 = vrcp.pop %v1717
        %v1726 = vrcp.pop %v1720
        %v1727 = vrcp.pop %v1723
        %v1728 = vmul.f32 %v1705, %v1724
        %v1729 = vmul.f32 %v1707, %v1725
        %v1730 = vmul.f32 %v1709, %v1726
        %v1731 = vmul.f32 %v1711, %v1727
        %v1732 = vpack.c.bf16 %v1728, %v1728
        %v1733 = vpack.c.bf16 %v1729, %v1729
        %v1734 = vpack.c.bf16 %v1730, %v1730
        %v1735 = vpack.c.bf16 %v1731, %v1731
        %v1736 = vpack.c.bf16 %v1562, %v1562
        %v1737 = vpack.c.bf16 %v1575, %v1575
        %v1738 = vpack.c.bf16 %v1588, %v1588
        %v1739 = vpack.c.bf16 %v1601, %v1601
        %v1741 = vsel %vm626, %v1732, 0
        %v1744 = vsel %vm758, %v1736, 0
        %1746 = vmatpush.bf16.msra.mxu0 0
        %1747 = vmatpush.bf16.msra.mxu0 0
        %1748 = vmatpush.bf16.msra.mxu0 0
        %1749 = vmatpush.bf16.msra.mxu0 0
        %1750 = vmatpush.bf16.msra.mxu0 0
        %1751 = vmatpush.bf16.msra.mxu0 0
        %1752 = vmatpush.bf16.msra.mxu0 0
        %1753 = vmatpush.bf16.msra.mxu0 %v1744
        %1754 = vmatmul.bf16.gmra.mxu0 %v1741
        %v1755 = vpop.f32.mrf.mxu0
        %v1756 = vadd.f32 0.0, %v1755
        %v1757 = vpop.f32.mrf.mxu0
        %1758 = vdwg.mxu0
        %v1760 = vsel %vm626, %v1733, 0
        %v1763 = vsel %vm758, %v1737, 0
        %1765 = vmatpush.bf16.msra.mxu0 0
        %1766 = vmatpush.bf16.msra.mxu0 0
        %1767 = vmatpush.bf16.msra.mxu0 0
        %1768 = vmatpush.bf16.msra.mxu0 0
        %1769 = vmatpush.bf16.msra.mxu0 0
        %1770 = vmatpush.bf16.msra.mxu0 0
        %1771 = vmatpush.bf16.msra.mxu0 0
        %1772 = vmatpush.bf16.msra.mxu0 %v1763
        %1773 = vmatmul.bf16.gmra.mxu0 %v1760
        %v1774 = vpop.f32.mrf.mxu0
        %v1775 = vadd.f32 0.0, %v1774
        %v1776 = vpop.f32.mrf.mxu0
        %1777 = vdwg.mxu0
        %v1779 = vsel %vm626, %v1734, 0
        %v1782 = vsel %vm758, %v1738, 0
        %1784 = vmatpush.bf16.msra.mxu0 0
        %1785 = vmatpush.bf16.msra.mxu0 0
        %1786 = vmatpush.bf16.msra.mxu0 0
        %1787 = vmatpush.bf16.msra.mxu0 0
        %1788 = vmatpush.bf16.msra.mxu0 0
        %1789 = vmatpush.bf16.msra.mxu0 0
        %1790 = vmatpush.bf16.msra.mxu0 0
        %1791 = vmatpush.bf16.msra.mxu0 %v1782
        %1792 = vmatmul.bf16.gmra.mxu0 %v1779
        %v1793 = vpop.f32.mrf.mxu0
        %v1794 = vadd.f32 0.0, %v1793
        %v1795 = vpop.f32.mrf.mxu0
        %1796 = vdwg.mxu0
        %v1798 = vsel %vm626, %v1735, 0
        %v1801 = vsel %vm758, %v1739, 0
        %1803 = vmatpush.bf16.msra.mxu0 0
        %1804 = vmatpush.bf16.msra.mxu0 0
        %1805 = vmatpush.bf16.msra.mxu0 0
        %1806 = vmatpush.bf16.msra.mxu0 0
        %1807 = vmatpush.bf16.msra.mxu0 0
        %1808 = vmatpush.bf16.msra.mxu0 0
        %1809 = vmatpush.bf16.msra.mxu0 0
        %1810 = vmatpush.bf16.msra.mxu0 %v1801
        %1811 = vmatmul.bf16.gmra.mxu0 %v1798
        %v1812 = vpop.f32.mrf.mxu0
        %v1813 = vadd.f32 0.0, %v1812
        %v1814 = vpop.f32.mrf.mxu0
        %1815 = vdwg.mxu0
        %v1816 = vpack.c.bf16 %v1756, %v1756
        %v1817 = vpack.c.bf16 %v1775, %v1775
        %v1818 = vpack.c.bf16 %v1794, %v1794
        %v1819 = vpack.c.bf16 %v1813, %v1813
        %v1821 = vsel %vm626, %v1816, 0
        %v1824 = vsel %vm758, %v1411, 0
        %1826 = vmatpush.bf16.msra.mxu0 0
        %1827 = vmatpush.bf16.msra.mxu0 0
        %1828 = vmatpush.bf16.msra.mxu0 0
        %1829 = vmatpush.bf16.msra.mxu0 0
        %1830 = vmatpush.bf16.msra.mxu0 0
        %1831 = vmatpush.bf16.msra.mxu0 0
        %1832 = vmatpush.bf16.msra.mxu0 0
        %1833 = vmatpush.bf16.msra.mxu0 %v1824
        %1834 = vmatmul.bf16.gmra.mxu0 %v1821
        %v1835 = vpop.f32.mrf.mxu0
        %v1836 = vadd.f32 0.0, %v1835
        %v1837 = vpop.f32.mrf.mxu0
        %1838 = vdwg.mxu0
        %v1840 = vsel %vm626, %v1817, 0
        %1842 = vmatpush.bf16.msra.mxu0 0
        %1843 = vmatpush.bf16.msra.mxu0 0
        %1844 = vmatpush.bf16.msra.mxu0 0
        %1845 = vmatpush.bf16.msra.mxu0 0
        %1846 = vmatpush.bf16.msra.mxu0 0
        %1847 = vmatpush.bf16.msra.mxu0 0
        %1848 = vmatpush.bf16.msra.mxu0 0
        %1849 = vmatpush.bf16.msra.mxu0 %v1824
        %1850 = vmatmul.bf16.gmra.mxu0 %v1840
        %v1851 = vpop.f32.mrf.mxu0
        %v1852 = vadd.f32 0.0, %v1851
        %v1853 = vpop.f32.mrf.mxu0
        %1854 = vdwg.mxu0
        %v1856 = vsel %vm626, %v1818, 0
        %1858 = vmatpush.bf16.msra.mxu0 0
        %1859 = vmatpush.bf16.msra.mxu0 0
        %1860 = vmatpush.bf16.msra.mxu0 0
        %1861 = vmatpush.bf16.msra.mxu0 0
        %1862 = vmatpush.bf16.msra.mxu0 0
        %1863 = vmatpush.bf16.msra.mxu0 0
        %1864 = vmatpush.bf16.msra.mxu0 0
        %1865 = vmatpush.bf16.msra.mxu0 %v1824
        %1866 = vmatmul.bf16.gmra.mxu0 %v1856
        %v1867 = vpop.f32.mrf.mxu0
        %v1868 = vadd.f32 0.0, %v1867
        %v1869 = vpop.f32.mrf.mxu0
        %1870 = vdwg.mxu0
        %v1872 = vsel %vm626, %v1819, 0
        %1874 = vmatpush.bf16.msra.mxu0 0
        %1875 = vmatpush.bf16.msra.mxu0 0
        %1876 = vmatpush.bf16.msra.mxu0 0
        %1877 = vmatpush.bf16.msra.mxu0 0
        %1878 = vmatpush.bf16.msra.mxu0 0
        %1879 = vmatpush.bf16.msra.mxu0 0
        %1880 = vmatpush.bf16.msra.mxu0 0
        %1881 = vmatpush.bf16.msra.mxu0 %v1824
        %1882 = vmatmul.bf16.gmra.mxu0 %v1872
        %v1883 = vpop.f32.mrf.mxu0
        %v1884 = vadd.f32 0.0, %v1883
        %v1885 = vpop.f32.mrf.mxu0
        %1886 = vdwg.mxu0
        %v1887 = vadd.f32 %v1344, %v1836
        %v1888 = vadd.f32 %v1360, %v1852
        %v1889 = vadd.f32 %v1376, %v1868
        %v1890 = vadd.f32 %v1392, %v1884
        %s1891 = scalar_lea.vmem %s3, 48
        %v1892 = vld [vmem:[%s1891] sm:$0xf]
        %v1893 = vld [vmem:[%s1891 + $0x4] sm:$0xf]
        %v1894 = vld [vmem:[%s1891 + $0x8] sm:$0xf]
        %v1895 = vld [vmem:[%s1891 + $0xc] sm:$0xf]
        %s1896 = scalar_lea.vmem %s4, 48
        %v1897 = vld [vmem:[%s1896] sm:$0xf]
        %v1898 = vld [vmem:[%s1896 + $0x4] sm:$0xf]
        %v1899 = vld [vmem:[%s1896 + $0x8] sm:$0xf]
        %v1900 = vld [vmem:[%s1896 + $0xc] sm:$0xf]
        %s1901 = scalar_lea.vmem %s5, 48
        %v1902 = vld [vmem:[%s1901] sm:$0xf]
        %v1903 = vld [vmem:[%s1901 + $0x4] sm:$0xf]
        %v1904 = vld [vmem:[%s1901 + $0x8] sm:$0xf]
        %v1905 = vld [vmem:[%s1901 + $0xc] sm:$0xf]
        %s1906 = scalar_lea.vmem %s6, 12
        %v1907 = vld [vmem:[%s1906] sm:$0xf]
        %v1912 = vunpack.c.l.b16 %v1892
        %v1913 = vunpack.c.l.b16 %v1893
        %v1914 = vunpack.c.l.b16 %v1894
        %v1915 = vunpack.c.l.b16 %v1895
        %v1916 = vpack.c.b16 %v1913, %v1912
        %v1917 = vpack.c.b16 %v1915, %v1914
        %1920 = vmatpush.bf16.msra.mxu0 0
        %1921 = vmatpush.bf16.msra.mxu0 0
        %1922 = vmatpush.bf16.msra.mxu0 0
        %1923 = vmatpush.bf16.msra.mxu0 0
        %1924 = vmatpush.bf16.msra.mxu0 0
        %1925 = vmatpush.bf16.msra.mxu0 0
        %1926 = vmatpush.bf16.msra.mxu0 %v1917
        %1927 = vmatpush.bf16.msra.mxu0 %v1916
        %1928 = vmatmul.bf16.gmra.mxu0 %v403
        %v1929 = vpop.f32.mrf.mxu0
        %v1930 = vadd.f32 0.0, %v1929
        %v1931 = vpop.f32.mrf.mxu0
        %1932 = vdwg.mxu0
        %1933 = vmatpush.bf16.msra.mxu0 0
        %1934 = vmatpush.bf16.msra.mxu0 0
        %1935 = vmatpush.bf16.msra.mxu0 0
        %1936 = vmatpush.bf16.msra.mxu0 0
        %1937 = vmatpush.bf16.msra.mxu0 0
        %1938 = vmatpush.bf16.msra.mxu0 0
        %1939 = vmatpush.bf16.msra.mxu0 %v1917
        %1940 = vmatpush.bf16.msra.mxu0 %v1916
        %1941 = vmatmul.bf16.gmra.mxu0 %v419
        %v1942 = vpop.f32.mrf.mxu0
        %v1943 = vadd.f32 0.0, %v1942
        %v1944 = vpop.f32.mrf.mxu0
        %1945 = vdwg.mxu0
        %1946 = vmatpush.bf16.msra.mxu0 0
        %1947 = vmatpush.bf16.msra.mxu0 0
        %1948 = vmatpush.bf16.msra.mxu0 0
        %1949 = vmatpush.bf16.msra.mxu0 0
        %1950 = vmatpush.bf16.msra.mxu0 0
        %1951 = vmatpush.bf16.msra.mxu0 0
        %1952 = vmatpush.bf16.msra.mxu0 %v1917
        %1953 = vmatpush.bf16.msra.mxu0 %v1916
        %1954 = vmatmul.bf16.gmra.mxu0 %v435
        %v1955 = vpop.f32.mrf.mxu0
        %v1956 = vadd.f32 0.0, %v1955
        %v1957 = vpop.f32.mrf.mxu0
        %1958 = vdwg.mxu0
        %1959 = vmatpush.bf16.msra.mxu0 0
        %1960 = vmatpush.bf16.msra.mxu0 0
        %1961 = vmatpush.bf16.msra.mxu0 0
        %1962 = vmatpush.bf16.msra.mxu0 0
        %1963 = vmatpush.bf16.msra.mxu0 0
        %1964 = vmatpush.bf16.msra.mxu0 0
        %1965 = vmatpush.bf16.msra.mxu0 %v1917
        %1966 = vmatpush.bf16.msra.mxu0 %v1916
        %1967 = vmatmul.bf16.gmra.mxu0 %v451
        %v1968 = vpop.f32.mrf.mxu0
        %v1969 = vadd.f32 0.0, %v1968
        %v1970 = vpop.f32.mrf.mxu0
        %1971 = vdwg.mxu0
        %v1976 = vunpack.c.l.b16 %v1897
        %v1977 = vunpack.c.l.b16 %v1898
        %v1978 = vunpack.c.l.b16 %v1899
        %v1979 = vunpack.c.l.b16 %v1900
        %v1980 = vpack.c.b16 %v1977, %v1976
        %v1981 = vpack.c.b16 %v1979, %v1978
        %1984 = vmatpush.bf16.msra.mxu0 0
        %1985 = vmatpush.bf16.msra.mxu0 0
        %1986 = vmatpush.bf16.msra.mxu0 0
        %1987 = vmatpush.bf16.msra.mxu0 0
        %1988 = vmatpush.bf16.msra.mxu0 0
        %1989 = vmatpush.bf16.msra.mxu0 0
        %1990 = vmatpush.bf16.msra.mxu0 %v1981
        %1991 = vmatpush.bf16.msra.mxu0 %v1980
        %1992 = vmatmul.bf16.gmra.mxu0 %v479
        %v1993 = vpop.f32.mrf.mxu0
        %v1994 = vadd.f32 0.0, %v1993
        %v1995 = vpop.f32.mrf.mxu0
        %1996 = vdwg.mxu0
        %1997 = vmatpush.bf16.msra.mxu0 0
        %1998 = vmatpush.bf16.msra.mxu0 0
        %1999 = vmatpush.bf16.msra.mxu0 0
        %2000 = vmatpush.bf16.msra.mxu0 0
        %2001 = vmatpush.bf16.msra.mxu0 0
        %2002 = vmatpush.bf16.msra.mxu0 0
        %2003 = vmatpush.bf16.msra.mxu0 %v1981
        %2004 = vmatpush.bf16.msra.mxu0 %v1980
        %2005 = vmatmul.bf16.gmra.mxu0 %v495
        %v2006 = vpop.f32.mrf.mxu0
        %v2007 = vadd.f32 0.0, %v2006
        %v2008 = vpop.f32.mrf.mxu0
        %2009 = vdwg.mxu0
        %2010 = vmatpush.bf16.msra.mxu0 0
        %2011 = vmatpush.bf16.msra.mxu0 0
        %2012 = vmatpush.bf16.msra.mxu0 0
        %2013 = vmatpush.bf16.msra.mxu0 0
        %2014 = vmatpush.bf16.msra.mxu0 0
        %2015 = vmatpush.bf16.msra.mxu0 0
        %2016 = vmatpush.bf16.msra.mxu0 %v1981
        %2017 = vmatpush.bf16.msra.mxu0 %v1980
        %2018 = vmatmul.bf16.gmra.mxu0 %v511
        %v2019 = vpop.f32.mrf.mxu0
        %v2020 = vadd.f32 0.0, %v2019
        %v2021 = vpop.f32.mrf.mxu0
        %2022 = vdwg.mxu0
        %2023 = vmatpush.bf16.msra.mxu0 0
        %2024 = vmatpush.bf16.msra.mxu0 0
        %2025 = vmatpush.bf16.msra.mxu0 0
        %2026 = vmatpush.bf16.msra.mxu0 0
        %2027 = vmatpush.bf16.msra.mxu0 0
        %2028 = vmatpush.bf16.msra.mxu0 0
        %2029 = vmatpush.bf16.msra.mxu0 %v1981
        %2030 = vmatpush.bf16.msra.mxu0 %v1980
        %2031 = vmatmul.bf16.gmra.mxu0 %v527
        %v2032 = vpop.f32.mrf.mxu0
        %v2033 = vadd.f32 0.0, %v2032
        %v2034 = vpop.f32.mrf.mxu0
        %2035 = vdwg.mxu0
        %v2040 = vunpack.c.l.b16 %v1902
        %v2041 = vunpack.c.l.b16 %v1903
        %v2042 = vunpack.c.l.b16 %v1904
        %v2043 = vunpack.c.l.b16 %v1905
        %v2044 = vpack.c.b16 %v2041, %v2040
        %v2045 = vpack.c.b16 %v2043, %v2042
        %2048 = vmatpush.bf16.msra.mxu0 0
        %2049 = vmatpush.bf16.msra.mxu0 0
        %2050 = vmatpush.bf16.msra.mxu0 0
        %2051 = vmatpush.bf16.msra.mxu0 0
        %2052 = vmatpush.bf16.msra.mxu0 0
        %2053 = vmatpush.bf16.msra.mxu0 0
        %2054 = vmatpush.bf16.msra.mxu0 %v2045
        %2055 = vmatpush.bf16.msra.mxu0 %v2044
        %2056 = vmatmul.bf16.gmra.mxu0 %v555
        %v2057 = vpop.f32.mrf.mxu0
        %v2058 = vadd.f32 0.0, %v2057
        %v2059 = vpop.f32.mrf.mxu0
        %2060 = vdwg.mxu0
        %2061 = vmatpush.bf16.msra.mxu0 0
        %2062 = vmatpush.bf16.msra.mxu0 0
        %2063 = vmatpush.bf16.msra.mxu0 0
        %2064 = vmatpush.bf16.msra.mxu0 0
        %2065 = vmatpush.bf16.msra.mxu0 0
        %2066 = vmatpush.bf16.msra.mxu0 0
        %2067 = vmatpush.bf16.msra.mxu0 %v2045
        %2068 = vmatpush.bf16.msra.mxu0 %v2044
        %2069 = vmatmul.bf16.gmra.mxu0 %v571
        %v2070 = vpop.f32.mrf.mxu0
        %v2071 = vadd.f32 0.0, %v2070
        %v2072 = vpop.f32.mrf.mxu0
        %2073 = vdwg.mxu0
        %2074 = vmatpush.bf16.msra.mxu0 0
        %2075 = vmatpush.bf16.msra.mxu0 0
        %2076 = vmatpush.bf16.msra.mxu0 0
        %2077 = vmatpush.bf16.msra.mxu0 0
        %2078 = vmatpush.bf16.msra.mxu0 0
        %2079 = vmatpush.bf16.msra.mxu0 0
        %2080 = vmatpush.bf16.msra.mxu0 %v2045
        %2081 = vmatpush.bf16.msra.mxu0 %v2044
        %2082 = vmatmul.bf16.gmra.mxu0 %v587
        %v2083 = vpop.f32.mrf.mxu0
        %v2084 = vadd.f32 0.0, %v2083
        %v2085 = vpop.f32.mrf.mxu0
        %2086 = vdwg.mxu0
        %2087 = vmatpush.bf16.msra.mxu0 0
        %2088 = vmatpush.bf16.msra.mxu0 0
        %2089 = vmatpush.bf16.msra.mxu0 0
        %2090 = vmatpush.bf16.msra.mxu0 0
        %2091 = vmatpush.bf16.msra.mxu0 0
        %2092 = vmatpush.bf16.msra.mxu0 0
        %2093 = vmatpush.bf16.msra.mxu0 %v2045
        %2094 = vmatpush.bf16.msra.mxu0 %v2044
        %2095 = vmatmul.bf16.gmra.mxu0 %v603
        %v2096 = vpop.f32.mrf.mxu0
        %v2097 = vadd.f32 0.0, %v2096
        %v2098 = vpop.f32.mrf.mxu0
        %2099 = vdwg.mxu0
        %v2100 = vpack.c.bf16 %v1930, %v1930
        %v2101 = vpack.c.bf16 %v1943, %v1943
        %v2102 = vpack.c.bf16 %v1956, %v1956
        %v2103 = vpack.c.bf16 %v1969, %v1969
        %v2104 = vpack.c.bf16 %v1994, %v1994
        %v2105 = vpack.c.bf16 %v2007, %v2007
        %v2106 = vpack.c.bf16 %v2020, %v2020
        %v2107 = vpack.c.bf16 %v2033, %v2033
        %v2109 = vsel %vm626, %v2100, 0
        %v2112 = vsel %vm626, %v2104, 0
        %2114 = vmatpush.bf16.xpose.msra.mxu0 0
        %2115 = vmatpush.bf16.xpose.msra.mxu0 0
        %2116 = vmatpush.bf16.xpose.msra.mxu0 0
        %2117 = vmatpush.bf16.xpose.msra.mxu0 0
        %2118 = vmatpush.bf16.xpose.msra.mxu0 0
        %2119 = vmatpush.bf16.xpose.msra.mxu0 0
        %2120 = vmatpush.bf16.xpose.msra.mxu0 0
        %2121 = vmatpush.bf16.xpose.msra.mxu0 %v2112
        %2122 = vmatmul.bf16.gmra.mxu0 %v2109
        %v2123 = vpop.f32.mrf.mxu0
        %v2124 = vadd.f32 0.0, %v2123
        %v2125 = vpop.f32.mrf.mxu0
        %2126 = vdwg.mxu0
        %v2128 = vsel %vm626, %v2101, 0
        %v2131 = vsel %vm626, %v2105, 0
        %2133 = vmatpush.bf16.xpose.msra.mxu0 0
        %2134 = vmatpush.bf16.xpose.msra.mxu0 0
        %2135 = vmatpush.bf16.xpose.msra.mxu0 0
        %2136 = vmatpush.bf16.xpose.msra.mxu0 0
        %2137 = vmatpush.bf16.xpose.msra.mxu0 0
        %2138 = vmatpush.bf16.xpose.msra.mxu0 0
        %2139 = vmatpush.bf16.xpose.msra.mxu0 0
        %2140 = vmatpush.bf16.xpose.msra.mxu0 %v2131
        %2141 = vmatmul.bf16.gmra.mxu0 %v2128
        %v2142 = vpop.f32.mrf.mxu0
        %v2143 = vadd.f32 0.0, %v2142
        %v2144 = vpop.f32.mrf.mxu0
        %2145 = vdwg.mxu0
        %v2147 = vsel %vm626, %v2102, 0
        %v2150 = vsel %vm626, %v2106, 0
        %2152 = vmatpush.bf16.xpose.msra.mxu0 0
        %2153 = vmatpush.bf16.xpose.msra.mxu0 0
        %2154 = vmatpush.bf16.xpose.msra.mxu0 0
        %2155 = vmatpush.bf16.xpose.msra.mxu0 0
        %2156 = vmatpush.bf16.xpose.msra.mxu0 0
        %2157 = vmatpush.bf16.xpose.msra.mxu0 0
        %2158 = vmatpush.bf16.xpose.msra.mxu0 0
        %2159 = vmatpush.bf16.xpose.msra.mxu0 %v2150
        %2160 = vmatmul.bf16.gmra.mxu0 %v2147
        %v2161 = vpop.f32.mrf.mxu0
        %v2162 = vadd.f32 0.0, %v2161
        %v2163 = vpop.f32.mrf.mxu0
        %2164 = vdwg.mxu0
        %v2166 = vsel %vm626, %v2103, 0
        %v2169 = vsel %vm626, %v2107, 0
        %2171 = vmatpush.bf16.xpose.msra.mxu0 0
        %2172 = vmatpush.bf16.xpose.msra.mxu0 0
        %2173 = vmatpush.bf16.xpose.msra.mxu0 0
        %2174 = vmatpush.bf16.xpose.msra.mxu0 0
        %2175 = vmatpush.bf16.xpose.msra.mxu0 0
        %2176 = vmatpush.bf16.xpose.msra.mxu0 0
        %2177 = vmatpush.bf16.xpose.msra.mxu0 0
        %2178 = vmatpush.bf16.xpose.msra.mxu0 %v2169
        %2179 = vmatmul.bf16.gmra.mxu0 %v2166
        %v2180 = vpop.f32.mrf.mxu0
        %v2181 = vadd.f32 0.0, %v2180
        %v2182 = vpop.f32.mrf.mxu0
        %2183 = vdwg.mxu0
        %v2184 = vsel %vm626, %v2124, -inf
        %2185 = vmax.xlane.f32.xlu0 %v2184
        %v2186 = vpop.xlane.xlu0 %2185
        %v2187 = vsel %vm626, %v2143, -inf
        %2188 = vmax.xlane.f32.xlu0 %v2187
        %v2189 = vpop.xlane.xlu0 %2188
        %v2190 = vsel %vm626, %v2162, -inf
        %2191 = vmax.xlane.f32.xlu0 %v2190
        %v2192 = vpop.xlane.xlu0 %2191
        %v2193 = vsel %vm626, %v2181, -inf
        %2194 = vmax.xlane.f32.xlu0 %v2193
        %v2195 = vpop.xlane.xlu0 %2194
        %v2196 = vsub.f32 %v2124, %v2186
        %v2197 = vsub.f32 %v2143, %v2189
        %v2198 = vsub.f32 %v2162, %v2192
        %v2199 = vsub.f32 %v2181, %v2195
        %v2200 = vmul.f32 %v2196, 1.442695
        %v2201 = vpow.pop %v2200
        %v2202 = vmul.f32 %v2197, 1.442695
        %v2203 = vpow.pop %v2202
        %v2204 = vmul.f32 %v2198, 1.442695
        %v2205 = vpow.pop %v2204
        %v2206 = vmul.f32 %v2199, 1.442695
        %v2207 = vpow.pop %v2206
        %v2208 = vsel %vm626, %v2201, 0.0
        %2209 = vadd.xlane.f32.xlu0 %v2208
        %v2210 = vpop.xlane.xlu0 %2209
        %v2211 = vsel %vm626, %v2203, 0.0
        %2212 = vadd.xlane.f32.xlu0 %v2211
        %v2213 = vpop.xlane.xlu0 %2212
        %v2214 = vsel %vm626, %v2205, 0.0
        %2215 = vadd.xlane.f32.xlu0 %v2214
        %v2216 = vpop.xlane.xlu0 %2215
        %v2217 = vsel %vm626, %v2207, 0.0
        %2218 = vadd.xlane.f32.xlu0 %v2217
        %v2219 = vpop.xlane.xlu0 %2218
        %v2220 = vrcp.pop %v2210
        %v2221 = vrcp.pop %v2213
        %v2222 = vrcp.pop %v2216
        %v2223 = vrcp.pop %v2219
        %v2224 = vmul.f32 %v2201, %v2220
        %v2225 = vmul.f32 %v2203, %v2221
        %v2226 = vmul.f32 %v2205, %v2222
        %v2227 = vmul.f32 %v2207, %v2223
        %v2228 = vpack.c.bf16 %v2224, %v2224
        %v2229 = vpack.c.bf16 %v2225, %v2225
        %v2230 = vpack.c.bf16 %v2226, %v2226
        %v2231 = vpack.c.bf16 %v2227, %v2227
        %v2232 = vpack.c.bf16 %v2058, %v2058
        %v2233 = vpack.c.bf16 %v2071, %v2071
        %v2234 = vpack.c.bf16 %v2084, %v2084
        %v2235 = vpack.c.bf16 %v2097, %v2097
        %v2237 = vsel %vm626, %v2228, 0
        %v2240 = vsel %vm758, %v2232, 0
        %2242 = vmatpush.bf16.msra.mxu0 0
        %2243 = vmatpush.bf16.msra.mxu0 0
        %2244 = vmatpush.bf16.msra.mxu0 0
        %2245 = vmatpush.bf16.msra.mxu0 0
        %2246 = vmatpush.bf16.msra.mxu0 0
        %2247 = vmatpush.bf16.msra.mxu0 0
        %2248 = vmatpush.bf16.msra.mxu0 0
        %2249 = vmatpush.bf16.msra.mxu0 %v2240
        %2250 = vmatmul.bf16.gmra.mxu0 %v2237
        %v2251 = vpop.f32.mrf.mxu0
        %v2252 = vadd.f32 0.0, %v2251
        %v2253 = vpop.f32.mrf.mxu0
        %2254 = vdwg.mxu0
        %v2256 = vsel %vm626, %v2229, 0
        %v2259 = vsel %vm758, %v2233, 0
        %2261 = vmatpush.bf16.msra.mxu0 0
        %2262 = vmatpush.bf16.msra.mxu0 0
        %2263 = vmatpush.bf16.msra.mxu0 0
        %2264 = vmatpush.bf16.msra.mxu0 0
        %2265 = vmatpush.bf16.msra.mxu0 0
        %2266 = vmatpush.bf16.msra.mxu0 0
        %2267 = vmatpush.bf16.msra.mxu0 0
        %2268 = vmatpush.bf16.msra.mxu0 %v2259
        %2269 = vmatmul.bf16.gmra.mxu0 %v2256
        %v2270 = vpop.f32.mrf.mxu0
        %v2271 = vadd.f32 0.0, %v2270
        %v2272 = vpop.f32.mrf.mxu0
        %2273 = vdwg.mxu0
        %v2275 = vsel %vm626, %v2230, 0
        %v2278 = vsel %vm758, %v2234, 0
        %2280 = vmatpush.bf16.msra.mxu0 0
        %2281 = vmatpush.bf16.msra.mxu0 0
        %2282 = vmatpush.bf16.msra.mxu0 0
        %2283 = vmatpush.bf16.msra.mxu0 0
        %2284 = vmatpush.bf16.msra.mxu0 0
        %2285 = vmatpush.bf16.msra.mxu0 0
        %2286 = vmatpush.bf16.msra.mxu0 0
        %2287 = vmatpush.bf16.msra.mxu0 %v2278
        %2288 = vmatmul.bf16.gmra.mxu0 %v2275
        %v2289 = vpop.f32.mrf.mxu0
        %v2290 = vadd.f32 0.0, %v2289
        %v2291 = vpop.f32.mrf.mxu0
        %2292 = vdwg.mxu0
        %v2294 = vsel %vm626, %v2231, 0
        %v2297 = vsel %vm758, %v2235, 0
        %2299 = vmatpush.bf16.msra.mxu0 0
        %2300 = vmatpush.bf16.msra.mxu0 0
        %2301 = vmatpush.bf16.msra.mxu0 0
        %2302 = vmatpush.bf16.msra.mxu0 0
        %2303 = vmatpush.bf16.msra.mxu0 0
        %2304 = vmatpush.bf16.msra.mxu0 0
        %2305 = vmatpush.bf16.msra.mxu0 0
        %2306 = vmatpush.bf16.msra.mxu0 %v2297
        %2307 = vmatmul.bf16.gmra.mxu0 %v2294
        %v2308 = vpop.f32.mrf.mxu0
        %v2309 = vadd.f32 0.0, %v2308
        %v2310 = vpop.f32.mrf.mxu0
        %2311 = vdwg.mxu0
        %v2312 = vpack.c.bf16 %v2252, %v2252
        %v2313 = vpack.c.bf16 %v2271, %v2271
        %v2314 = vpack.c.bf16 %v2290, %v2290
        %v2315 = vpack.c.bf16 %v2309, %v2309
        %v2317 = vsel %vm626, %v2312, 0
        %v2320 = vsel %vm758, %v1907, 0
        %2322 = vmatpush.bf16.msra.mxu0 0
        %2323 = vmatpush.bf16.msra.mxu0 0
        %2324 = vmatpush.bf16.msra.mxu0 0
        %2325 = vmatpush.bf16.msra.mxu0 0
        %2326 = vmatpush.bf16.msra.mxu0 0
        %2327 = vmatpush.bf16.msra.mxu0 0
        %2328 = vmatpush.bf16.msra.mxu0 0
        %2329 = vmatpush.bf16.msra.mxu0 %v2320
        %2330 = vmatmul.bf16.gmra.mxu0 %v2317
        %v2331 = vpop.f32.mrf.mxu0
        %v2332 = vadd.f32 0.0, %v2331
        %v2333 = vpop.f32.mrf.mxu0
        %2334 = vdwg.mxu0
        %v2336 = vsel %vm626, %v2313, 0
        %2338 = vmatpush.bf16.msra.mxu0 0
        %2339 = vmatpush.bf16.msra.mxu0 0
        %2340 = vmatpush.bf16.msra.mxu0 0
        %2341 = vmatpush.bf16.msra.mxu0 0
        %2342 = vmatpush.bf16.msra.mxu0 0
        %2343 = vmatpush.bf16.msra.mxu0 0
        %2344 = vmatpush.bf16.msra.mxu0 0
        %2345 = vmatpush.bf16.msra.mxu0 %v2320
        %2346 = vmatmul.bf16.gmra.mxu0 %v2336
        %v2347 = vpop.f32.mrf.mxu0
        %v2348 = vadd.f32 0.0, %v2347
        %v2349 = vpop.f32.mrf.mxu0
        %2350 = vdwg.mxu0
        %v2352 = vsel %vm626, %v2314, 0
        %2354 = vmatpush.bf16.msra.mxu0 0
        %2355 = vmatpush.bf16.msra.mxu0 0
        %2356 = vmatpush.bf16.msra.mxu0 0
        %2357 = vmatpush.bf16.msra.mxu0 0
        %2358 = vmatpush.bf16.msra.mxu0 0
        %2359 = vmatpush.bf16.msra.mxu0 0
        %2360 = vmatpush.bf16.msra.mxu0 0
        %2361 = vmatpush.bf16.msra.mxu0 %v2320
        %2362 = vmatmul.bf16.gmra.mxu0 %v2352
        %v2363 = vpop.f32.mrf.mxu0
        %v2364 = vadd.f32 0.0, %v2363
        %v2365 = vpop.f32.mrf.mxu0
        %2366 = vdwg.mxu0
        %v2368 = vsel %vm626, %v2315, 0
        %2370 = vmatpush.bf16.msra.mxu0 0
        %2371 = vmatpush.bf16.msra.mxu0 0
        %2372 = vmatpush.bf16.msra.mxu0 0
        %2373 = vmatpush.bf16.msra.mxu0 0
        %2374 = vmatpush.bf16.msra.mxu0 0
        %2375 = vmatpush.bf16.msra.mxu0 0
        %2376 = vmatpush.bf16.msra.mxu0 0
        %2377 = vmatpush.bf16.msra.mxu0 %v2320
        %2378 = vmatmul.bf16.gmra.mxu0 %v2368
        %v2379 = vpop.f32.mrf.mxu0
        %v2380 = vadd.f32 0.0, %v2379
        %v2381 = vpop.f32.mrf.mxu0
        %2382 = vdwg.mxu0
        %v2383 = vadd.f32 %v1887, %v2332
        %v2384 = vadd.f32 %v1888, %v2348
        %v2385 = vadd.f32 %v1889, %v2364
        %v2386 = vadd.f32 %v1890, %v2380
        %v2387 = vld [vmem:[%s7] sm:$0x1]
        %v2389 = vperm.slane %v2387, 0
        %v2391 = vadd.f32 %v2383, %v2389
        %v2392 = vadd.f32 %v2384, %v2389
        %v2393 = vadd.f32 %v2385, %v2389
        %v2394 = vadd.f32 %v2386, %v2389
        %2395 = vst.msk [vmem:[%s331] sm:$0xff] %vm401, %v2391
        %2396 = vst.msk [vmem:[%s331 + $0x8] sm:$0xff] %vm401, %v2392
        %2397 = vst.msk [vmem:[%s331 + $0x10] sm:$0xff] %vm401, %v2393
        %2398 = vst.msk [vmem:[%s331 + $0x18] sm:$0xff] %vm401, %v2394
        %s2399 = sand.u32 %s213, 1
        %s2400 = scalar_lea.sflag [#allocation3], %s2399
        %s2401 = sand.u32 %s213, 1
        %s2402 = smul.addr %s2401, 32
        %s2403 = scalar_lea.vmem [#allocation2], %s2402
        // Predicated region
        $region53: #{tpu_custom_call.1} parent=51 // pred_check
          %p2404 = pneg %p223
        $region54: #{tpu_custom_call.1} parent=51 // pred_check_branch
          %2406 = sbr.rel (%p2404) target = $region56
        $region55: #{tpu_custom_call.1} parent=51 // pred_region
          %s2407 = smul.u32 4, %s22
          %2409 = vsyncadd %s2400, 0
          %s2410 = smul.addr %s2407, 8
          %s2411 = scalar_lea.hbm %s8, %s2410
          %s2412 = sshll.u32 %s2403, 4
          %s2413 = int_to_ptr.vmem [resolvable:$true] %s2412
          %s2414 = sshll.u32 %s2411, 4
          %s2415 = int_to_ptr.hbm [resolvable:$true] %s2414
          %2420 = dma.vmem_to_hbm [thread:$0]  %s2413, 512, %s2415, %s2400, 128, 128, 8
        $region56: #{tpu_custom_call.1} parent=51 // pred_fallthru
          _
      $region52: #{tpu_custom_call.1} parent=5 // pred_fallthru
        _
      %p2421 = scmp.le.s32.totalorder 2, %s17
      // Predicated region
      $region57: #{tpu_custom_call.1} parent=5 // pred_check
        %p2422 = pneg %p2421
      $region58: #{tpu_custom_call.1} parent=5 // pred_check_branch
        %2424 = sbr.rel (%p2422) target = $region60
      $region59: #{tpu_custom_call.1} parent=5 // pred_region
        %s2425 = ssub.s32 %s17, 2
        // Predicated region
        $region61: #{tpu_custom_call.1} parent=59 // pred_check
          %p2426 = pneg %p229
        $region62: #{tpu_custom_call.1} parent=59 // pred_check_branch
          %2428 = sbr.rel (%p2426) target = $region64
        $region63: #{tpu_custom_call.1} parent=59 // pred_region
          %s2429 = sand.u32 %s214, 1
          %s2430 = scalar_lea.sflag [#allocation3], %s2429
          %s2431 = sand.u32 %s214, 1
          %s2432 = smul.addr %s2431, 32
          %s2433 = scalar_lea.vmem [#allocation2], %s2432
          %2435 = dma.done %s2430, 512
        $region64: #{tpu_custom_call.1} parent=59 // pred_fallthru
          _
      $region60: #{tpu_custom_call.1} parent=5 // pred_fallthru
        _
    $region6: #{tpu_custom_call.1} parent=1 // loop_footer
      %s21 = sadd.s32 1, %s17
    $region7: #{tpu_custom_call.1} parent=1 // loop_footer_branch
      %16 = sbr.rel target = $region3
    $region8: #{tpu_custom_call.1} parent=1 // loop_exit
      _
    %2436 = vsyncpa [#allocation3], 1
    %s2437 = scalar_lea.sflag [#allocation3], 1
    %2438 = vsyncpa %s2437, 1

</llo_original>
